<compile_context>
chip_gen: v7x
topology: tpu7x:2x2x1
jax: 0.10.0
libtpu: 0.0.40
codegen_flags: <defaults>
</compile_context>

<pallas_src>
import jax
import jax.numpy as jnp
from jax.experimental import pallas as pl
from jax.experimental.pallas import tpu as pltpu

OPERATORS = ['Projection', 'Selection', 'Sort', 'HashAgg', 'HashJoin',
             'IndexHashJoin', 'TableScan', 'IndexScan', 'TableRowIDScan',
             'IndexRangeScan', 'IndexFullScan', 'TableFullScan',
             'IndexLookUp', 'TableReader', 'IndexReader']

IN_DIM = len(OPERATORS) * 3          # 45
LAYER_DIMS = [IN_DIM, 64, 256, 64, 16, 1]

TILE_B = 2048                        # batch columns (lanes) per grid step


def mlp_kernel(x_ref,
               w1_ref, b1_ref,
               w2_ref, b2_ref,
               w3_ref, b3_ref,
               w4_ref, b4_ref,
               w5_ref, b5_ref,
               o_ref):
    """One batch tile of the MLP in feature-major layout, fully in VMEM.

    x_ref: (45, T) bf16, weights W_l: (out, in) bf16, biases: (out, 1) f32.
    Activations are (out, T): batch on lanes -> lane-dense everywhere.
    """
    h = x_ref[...]                                                 # bf16 (45, T)

    h = jnp.dot(w1_ref[...], h, preferred_element_type=jnp.float32) + b1_ref[...]
    h = jnp.maximum(h, 0.0).astype(jnp.bfloat16)                   # (64, T)

    h = jnp.dot(w2_ref[...], h, preferred_element_type=jnp.float32) + b2_ref[...]
    h = jnp.maximum(h, 0.0).astype(jnp.bfloat16)                   # (256, T)

    h = jnp.dot(w3_ref[...], h, preferred_element_type=jnp.float32) + b3_ref[...]
    h = jnp.maximum(h, 0.0).astype(jnp.bfloat16)                   # (64, T)

    h = jnp.dot(w4_ref[...], h, preferred_element_type=jnp.float32) + b4_ref[...]
    h = jnp.maximum(h, 0.0)                                        # f32 (16, T)

    # Last layer 16->1: VPU multiply by the (16,1) weight column + sublane
    # reduce of the lane-dense (16, T) tile -> already in output orientation.
    out = jnp.sum(h * w5_ref[...], axis=0, keepdims=True) + b5_ref[...]  # (1, T)
    o_ref[...] = out.astype(o_ref.dtype)


def init_params(key):
    """Deterministic PyTorch-style init; weights stored (in, out), biases (1, out)."""
    params = []
    for i in range(len(LAYER_DIMS) - 1):
        fan_in, fan_out = LAYER_DIMS[i], LAYER_DIMS[i + 1]
        key, wk, bk = jax.random.split(key, 3)
        bound = 1.0 / jnp.sqrt(fan_in)
        w = jax.random.uniform(wk, (fan_in, fan_out), jnp.float32, -bound, bound)
        b = jax.random.uniform(bk, (1, fan_out), jnp.float32, -bound, bound)
        params.append((w, b))
    return params


def _round_up(v, m):
    return ((v + m - 1) // m) * m


def your_model_forward(x, params, *, tile_b=TILE_B):
    """x: (B, 45) f32 -> (B, 1) f32, matching YourModel.forward()."""
    batch = x.shape[0]

    # Batch rides the lane axis: tiles are multiples of 128 lanes.
    # Clamp the tile so n_tiles >= 2, keeping the "parallel" grid axis
    # meaningful for v7x's 2 TensorCores (harmless on v5e/v6e).
    tile_b = min(tile_b, max(128, _round_up(pl.cdiv(batch, 2), 128)))
    n_tiles = max(2, pl.cdiv(batch, tile_b))
    padded = n_tiles * tile_b

    # Feature-major input: (45, padded) bf16 (halves HBM->VMEM bytes for x).
    x_t = jnp.transpose(x)
    if padded != batch:
        x_t = jnp.pad(x_t, ((0, 0), (0, padded - batch)))
    x_t = x_t.astype(jnp.bfloat16)

    (w1, b1), (w2, b2), (w3, b3), (w4, b4), (w5, b5) = params
    flat = [w1.T.astype(jnp.bfloat16), b1.reshape(-1, 1),
            w2.T.astype(jnp.bfloat16), b2.reshape(-1, 1),
            w3.T.astype(jnp.bfloat16), b3.reshape(-1, 1),
            w4.T.astype(jnp.bfloat16), b4.reshape(-1, 1),
            # w5 shipped as a (16, 1) f32 column: used elementwise on the VPU.
            w5.reshape(LAYER_DIMS[4], 1).astype(jnp.float32),
            b5.reshape(1, 1)]

    def resident_spec(arr):
        # Full-shape block, constant index_map -> stays in VMEM across steps.
        return pl.BlockSpec(arr.shape, lambda i: (0,) * arr.ndim)

    in_specs = ([pl.BlockSpec((IN_DIM, tile_b), lambda i: (0, i))]
                + [resident_spec(a) for a in flat])

    out = pl.pallas_call(
        mlp_kernel,
        out_shape=jax.ShapeDtypeStruct((1, padded), jnp.float32),
        grid=(n_tiles,),
        in_specs=in_specs,
        # Lane-dense output row: unmasked full-width stores + dense writeback.
        out_specs=pl.BlockSpec((1, tile_b), lambda i: (0, i)),
        compiler_params=pltpu.CompilerParams(
            # Batch tiles are independent -> shard across v7x's 2 TCs.
            dimension_semantics=("parallel",),
            # Insurance for v5e's 16 MiB default scoped VMEM; safe everywhere.
            vmem_limit_bytes=32 * 1024 * 1024,
        ),
    )(x_t, *flat)

    return out[0, :batch].reshape(batch, 1)


def reference_forward(x, params):
    """Pure-JAX reference mirroring the kernel's bf16-operand / f32-accum math."""
    (w1, b1), (w2, b2), (w3, b3), (w4, b4), (w5, b5) = params
    h = x.astype(jnp.bfloat16)
    h = jnp.dot(h, w1.astype(jnp.bfloat16), preferred_element_type=jnp.float32) + b1
    h = jnp.maximum(h, 0.0).astype(jnp.bfloat16)
    h = jnp.dot(h, w2.astype(jnp.bfloat16), preferred_element_type=jnp.float32) + b2
    h = jnp.maximum(h, 0.0).astype(jnp.bfloat16)
    h = jnp.dot(h, w3.astype(jnp.bfloat16), preferred_element_type=jnp.float32) + b3
    h = jnp.maximum(h, 0.0).astype(jnp.bfloat16)
    h = jnp.dot(h, w4.astype(jnp.bfloat16), preferred_element_type=jnp.float32) + b4
    h = jnp.maximum(h, 0.0)
    return jnp.sum(h * w5.reshape(1, -1), axis=-1, keepdims=True) + b5


if __name__ == "__main__":
    key = jax.random.PRNGKey(0)
    pkey, xkey, xkey2 = jax.random.split(key, 3)

    params = init_params(pkey)

    # Small-batch case (original __main__ scale): batch=8 -> 2 tiles of 128.
    x_small = jax.random.normal(xkey2, (8, IN_DIM), jnp.float32)
    out_small = jax.block_until_ready(your_model_forward(x_small, params))
    ref_small = reference_forward(x_small, params)
    assert out_small.shape == (8, 1), out_small.shape
    assert jnp.allclose(out_small, ref_small, atol=5e-3, rtol=5e-3), \
        "mismatch vs reference (batch=8)"

    # Multi-tile case: 1000 rows -> tile_b=512, 2 grid steps, padded to 1024.
    batch = 1000
    x = jax.random.normal(xkey, (batch, IN_DIM), jnp.float32)
    out = jax.block_until_ready(your_model_forward(x, params))
    ref = reference_forward(x, params)
    assert out.shape == (batch, 1), out.shape
    assert jnp.allclose(out, ref, atol=5e-3, rtol=5e-3), \
        "mismatch vs reference (batch=1000)"

    print("KERNEL_OK")
</pallas_src>

<mosaic_0001>
module attributes {stable_mosaic.version = 11 : i64} {
  func.func @mlp_kernel(%arg0: i32, %arg1: memref<45x128xbf16, #tpu.memory_space<vmem>>, %arg2: memref<64x45xbf16, #tpu.memory_space<vmem>>, %arg3: memref<64x1xf32, #tpu.memory_space<vmem>>, %arg4: memref<256x64xbf16, #tpu.memory_space<vmem>>, %arg5: memref<256x1xf32, #tpu.memory_space<vmem>>, %arg6: memref<64x256xbf16, #tpu.memory_space<vmem>>, %arg7: memref<64x1xf32, #tpu.memory_space<vmem>>, %arg8: memref<16x64xbf16, #tpu.memory_space<vmem>>, %arg9: memref<16x1xf32, #tpu.memory_space<vmem>>, %arg10: memref<16x1xf32, #tpu.memory_space<vmem>>, %arg11: memref<1x1xf32, #tpu.memory_space<vmem>>, %arg12: memref<1x128xf32, #tpu.memory_space<vmem>>) attributes {dimension_semantics = [#tpu.dimension_semantics<parallel>], iteration_bounds = array<i64: 2>, scalar_prefetch = 0 : i64, scratch_operands = 0 : i64, tpu.core_type = #tpu.core_type<tc>, window_params = [{transform_indices = @transform_0, window_bounds = array<i64: 45, 128>}, {pipeline_mode = #tpu.pipeline_mode<synchronous>, transform_indices = @transform_1, window_bounds = array<i64: 64, 45>}, {pipeline_mode = #tpu.pipeline_mode<synchronous>, transform_indices = @transform_2, window_bounds = array<i64: 64, 1>}, {pipeline_mode = #tpu.pipeline_mode<synchronous>, transform_indices = @transform_3, window_bounds = array<i64: 256, 64>}, {pipeline_mode = #tpu.pipeline_mode<synchronous>, transform_indices = @transform_4, window_bounds = array<i64: 256, 1>}, {pipeline_mode = #tpu.pipeline_mode<synchronous>, transform_indices = @transform_5, window_bounds = array<i64: 64, 256>}, {pipeline_mode = #tpu.pipeline_mode<synchronous>, transform_indices = @transform_6, window_bounds = array<i64: 64, 1>}, {pipeline_mode = #tpu.pipeline_mode<synchronous>, transform_indices = @transform_7, window_bounds = array<i64: 16, 64>}, {pipeline_mode = #tpu.pipeline_mode<synchronous>, transform_indices = @transform_8, window_bounds = array<i64: 16, 1>}, {pipeline_mode = #tpu.pipeline_mode<synchronous>, transform_indices = @transform_9, window_bounds = array<i64: 16, 1>}, {pipeline_mode = #tpu.pipeline_mode<synchronous>, transform_indices = @transform_10, window_bounds = array<i64: 1, 1>}, {transform_indices = @transform_11, window_bounds = array<i64: 1, 128>}]} {
    %c0 = arith.constant 0 : index
    %c0_0 = arith.constant 0 : index
    %0 = vector.load %arg1[%c0, %c0_0] : memref<45x128xbf16, #tpu.memory_space<vmem>>, vector<45x128xbf16>
    %c0_1 = arith.constant 0 : index
    %c0_2 = arith.constant 0 : index
    %1 = vector.load %arg2[%c0_1, %c0_2] : memref<64x45xbf16, #tpu.memory_space<vmem>>, vector<64x45xbf16>
    %cst = arith.constant dense<0.000000e+00> : vector<64x128xf32>
    %2 = tpu.matmul %1, %0, %cst {dimension_numbers = #tpu.dot_dimension_numbers<[1], [0], [0], [1], [0, 0, 1, 1], [], []>} : vector<64x45xbf16>, vector<45x128xbf16>, vector<64x128xf32> -> vector<64x128xf32>
    %c0_3 = arith.constant 0 : index
    %c0_4 = arith.constant 0 : index
    %3 = vector.load %arg3[%c0_3, %c0_4] : memref<64x1xf32, #tpu.memory_space<vmem>>, vector<64x1xf32>
    %4 = vector.broadcast %3 : vector<64x1xf32> to vector<64x128xf32>
    %5 = arith.addf %2, %4 : vector<64x128xf32>
    %cst_5 = arith.constant 0.000000e+00 : f32
    %6 = vector.broadcast %cst_5 : f32 to vector<64x128xf32>
    %7 = arith.maximumf %5, %6 : vector<64x128xf32>
    %8 = arith.truncf %7 : vector<64x128xf32> to vector<64x128xbf16>
    %c0_6 = arith.constant 0 : index
    %c0_7 = arith.constant 0 : index
    %9 = vector.load %arg4[%c0_6, %c0_7] : memref<256x64xbf16, #tpu.memory_space<vmem>>, vector<256x64xbf16>
    %cst_8 = arith.constant dense<0.000000e+00> : vector<256x128xf32>
    %10 = tpu.matmul %9, %8, %cst_8 {dimension_numbers = #tpu.dot_dimension_numbers<[1], [0], [0], [1], [0, 0, 1, 1], [], []>} : vector<256x64xbf16>, vector<64x128xbf16>, vector<256x128xf32> -> vector<256x128xf32>
    %c0_9 = arith.constant 0 : index
    %c0_10 = arith.constant 0 : index
    %11 = vector.load %arg5[%c0_9, %c0_10] : memref<256x1xf32, #tpu.memory_space<vmem>>, vector<256x1xf32>
    %12 = vector.broadcast %11 : vector<256x1xf32> to vector<256x128xf32>
    %13 = arith.addf %10, %12 : vector<256x128xf32>
    %cst_11 = arith.constant 0.000000e+00 : f32
    %14 = vector.broadcast %cst_11 : f32 to vector<256x128xf32>
    %15 = arith.maximumf %13, %14 : vector<256x128xf32>
    %16 = arith.truncf %15 : vector<256x128xf32> to vector<256x128xbf16>
    %c0_12 = arith.constant 0 : index
    %c0_13 = arith.constant 0 : index
    %17 = vector.load %arg6[%c0_12, %c0_13] : memref<64x256xbf16, #tpu.memory_space<vmem>>, vector<64x256xbf16>
    %cst_14 = arith.constant dense<0.000000e+00> : vector<64x128xf32>
    %18 = tpu.matmul %17, %16, %cst_14 {dimension_numbers = #tpu.dot_dimension_numbers<[1], [0], [0], [1], [0, 0, 1, 1], [], []>} : vector<64x256xbf16>, vector<256x128xbf16>, vector<64x128xf32> -> vector<64x128xf32>
    %c0_15 = arith.constant 0 : index
    %c0_16 = arith.constant 0 : index
    %19 = vector.load %arg7[%c0_15, %c0_16] : memref<64x1xf32, #tpu.memory_space<vmem>>, vector<64x1xf32>
    %20 = vector.broadcast %19 : vector<64x1xf32> to vector<64x128xf32>
    %21 = arith.addf %18, %20 : vector<64x128xf32>
    %cst_17 = arith.constant 0.000000e+00 : f32
    %22 = vector.broadcast %cst_17 : f32 to vector<64x128xf32>
    %23 = arith.maximumf %21, %22 : vector<64x128xf32>
    %24 = arith.truncf %23 : vector<64x128xf32> to vector<64x128xbf16>
    %c0_18 = arith.constant 0 : index
    %c0_19 = arith.constant 0 : index
    %25 = vector.load %arg8[%c0_18, %c0_19] : memref<16x64xbf16, #tpu.memory_space<vmem>>, vector<16x64xbf16>
    %cst_20 = arith.constant dense<0.000000e+00> : vector<16x128xf32>
    %26 = tpu.matmul %25, %24, %cst_20 {dimension_numbers = #tpu.dot_dimension_numbers<[1], [0], [0], [1], [0, 0, 1, 1], [], []>} : vector<16x64xbf16>, vector<64x128xbf16>, vector<16x128xf32> -> vector<16x128xf32>
    %c0_21 = arith.constant 0 : index
    %c0_22 = arith.constant 0 : index
    %27 = vector.load %arg9[%c0_21, %c0_22] : memref<16x1xf32, #tpu.memory_space<vmem>>, vector<16x1xf32>
    %28 = vector.broadcast %27 : vector<16x1xf32> to vector<16x128xf32>
    %29 = arith.addf %26, %28 : vector<16x128xf32>
    %cst_23 = arith.constant 0.000000e+00 : f32
    %30 = vector.broadcast %cst_23 : f32 to vector<16x128xf32>
    %31 = arith.maximumf %29, %30 : vector<16x128xf32>
    %c0_24 = arith.constant 0 : index
    %c0_25 = arith.constant 0 : index
    %32 = vector.load %arg10[%c0_24, %c0_25] : memref<16x1xf32, #tpu.memory_space<vmem>>, vector<16x1xf32>
    %33 = vector.broadcast %32 : vector<16x1xf32> to vector<16x128xf32>
    %34 = arith.mulf %31, %33 : vector<16x128xf32>
    %cst_26 = arith.constant dense<0.000000e+00> : vector<128xf32>
    %35 = vector.multi_reduction <add>, %34, %cst_26 [0] : vector<16x128xf32> to vector<128xf32>
    %36 = vector.shape_cast %35 : vector<128xf32> to vector<1x128xf32>
    %c0_27 = arith.constant 0 : index
    %c0_28 = arith.constant 0 : index
    %37 = vector.load %arg11[%c0_27, %c0_28] : memref<1x1xf32, #tpu.memory_space<vmem>>, vector<1x1xf32>
    %38 = vector.broadcast %37 : vector<1x1xf32> to vector<1x128xf32>
    %39 = arith.addf %36, %38 : vector<1x128xf32>
    %c0_29 = arith.constant 0 : index
    %c0_30 = arith.constant 0 : index
    %40 = vector.load %arg12[%c0_29, %c0_30] : memref<1x128xf32, #tpu.memory_space<vmem>>, vector<1x128xf32>
    tpu.vector_store %arg12[%c0_29, %c0_30], %39 {strides = array<i32>} : memref<1x128xf32, #tpu.memory_space<vmem>>, vector<1x128xf32>,
    return
  }
  func.func @transform_0(%arg0: i32) -> (i32, i32) {
    %c0_i32 = arith.constant 0 : i32
    %c0_i32_0 = arith.constant 0 : i32
    return %c0_i32, %arg0 : i32, i32
  }
  func.func @transform_1(%arg0: i32) -> (i32, i32) {
    %c0_i32 = arith.constant 0 : i32
    %c0_i32_0 = arith.constant 0 : i32
    %c0_i32_1 = arith.constant 0 : i32
    return %c0_i32, %c0_i32_0 : i32, i32
  }
  func.func @transform_2(%arg0: i32) -> (i32, i32) {
    %c0_i32 = arith.constant 0 : i32
    %c0_i32_0 = arith.constant 0 : i32
    %c0_i32_1 = arith.constant 0 : i32
    return %c0_i32, %c0_i32_0 : i32, i32
  }
  func.func @transform_3(%arg0: i32) -> (i32, i32) {
    %c0_i32 = arith.constant 0 : i32
    %c0_i32_0 = arith.constant 0 : i32
    %c0_i32_1 = arith.constant 0 : i32
    return %c0_i32, %c0_i32_0 : i32, i32
  }
  func.func @transform_4(%arg0: i32) -> (i32, i32) {
    %c0_i32 = arith.constant 0 : i32
    %c0_i32_0 = arith.constant 0 : i32
    %c0_i32_1 = arith.constant 0 : i32
    return %c0_i32, %c0_i32_0 : i32, i32
  }
  func.func @transform_5(%arg0: i32) -> (i32, i32) {
    %c0_i32 = arith.constant 0 : i32
    %c0_i32_0 = arith.constant 0 : i32
    %c0_i32_1 = arith.constant 0 : i32
    return %c0_i32, %c0_i32_0 : i32, i32
  }
  func.func @transform_6(%arg0: i32) -> (i32, i32) {
    %c0_i32 = arith.constant 0 : i32
    %c0_i32_0 = arith.constant 0 : i32
    %c0_i32_1 = arith.constant 0 : i32
    return %c0_i32, %c0_i32_0 : i32, i32
  }
  func.func @transform_7(%arg0: i32) -> (i32, i32) {
    %c0_i32 = arith.constant 0 : i32
    %c0_i32_0 = arith.constant 0 : i32
    %c0_i32_1 = arith.constant 0 : i32
    return %c0_i32, %c0_i32_0 : i32, i32
  }
  func.func @transform_8(%arg0: i32) -> (i32, i32) {
    %c0_i32 = arith.constant 0 : i32
    %c0_i32_0 = arith.constant 0 : i32
    %c0_i32_1 = arith.constant 0 : i32
    return %c0_i32, %c0_i32_0 : i32, i32
  }
  func.func @transform_9(%arg0: i32) -> (i32, i32) {
    %c0_i32 = arith.constant 0 : i32
    %c0_i32_0 = arith.constant 0 : i32
    %c0_i32_1 = arith.constant 0 : i32
    return %c0_i32, %c0_i32_0 : i32, i32
  }
  func.func @transform_10(%arg0: i32) -> (i32, i32) {
    %c0_i32 = arith.constant 0 : i32
    %c0_i32_0 = arith.constant 0 : i32
    %c0_i32_1 = arith.constant 0 : i32
    return %c0_i32, %c0_i32_0 : i32, i32
  }
  func.func @transform_11(%arg0: i32) -> (i32, i32) {
    %c0_i32 = arith.constant 0 : i32
    %c0_i32_0 = arith.constant 0 : i32
    return %c0_i32, %arg0 : i32, i32
  }
}

</mosaic_0001>

<llo_original>
// kernel: tpu_custom_call.1
$region0: #{tpu_custom_call.1}
  #allocation0 [shape = 'u32[]', space=smem, size = 0x4, offset = 0x4, fixed_abs, tag = 'smem constant byte address 0x4 - core index']
  #allocation1 [shape = 'u32[144,128]{1,0:T(1,128)}', space=vmem, size = 0x12000, scoped, tag = 'internal scratch']
  #allocation2 [shape = 'f32[1,1]{1,0:T(1,128)S(1)}', space=vmem, size = 0x200, scoped, tag = 'scoped memory for tpu_custom_call.1']
  %s0 = inlined_call_operand.vmem [shape: bf16[45,256], index: 0, kind: input, shape index: {}]
  %s1 = inlined_call_operand.vmem [shape: bf16[64,45], index: 1, kind: input, shape index: {}]
  %s2 = inlined_call_operand.vmem [shape: f32[64,1], index: 2, kind: input, shape index: {}]
  %s3 = inlined_call_operand.vmem [shape: bf16[256,64], index: 3, kind: input, shape index: {}]
  %s4 = inlined_call_operand.vmem [shape: f32[256,1], index: 4, kind: input, shape index: {}]
  %s5 = inlined_call_operand.vmem [shape: bf16[64,256], index: 5, kind: input, shape index: {}]
  %s6 = inlined_call_operand.vmem [shape: f32[64,1], index: 6, kind: input, shape index: {}]
  %s7 = inlined_call_operand.vmem [shape: bf16[16,64], index: 7, kind: input, shape index: {}]
  %s8 = inlined_call_operand.vmem [shape: f32[16,1], index: 8, kind: input, shape index: {}]
  %s9 = inlined_call_operand.vmem [shape: f32[16,1], index: 9, kind: input, shape index: {}]
  %s10 = inlined_call_operand.<no memory space> [shape: f32[1,1], index: 10, kind: input, shape index: {}]
  %s11 = inlined_call_operand.hbm [shape: f32[1,256], index: 11, kind: output, shape index: {}]
  %s12 = sld [smem:[#allocation0]]
  $region118: #{tpu_custom_call.1} parent=0
    _
  %s14 = ssub.s32 1, %s12
  %s15 = scalar_select 0, %s14, %s12
  %v16 = vstv %s10
  %17 = vst [vmem:[#allocation2] sm:$0x1] %v16
  $region1: #{tpu_custom_call.1} parent=0
    #allocation3 [shape = 'u8[24576]{0}', space=vmem, size = 0x6000, scoped, tag = 'input window, operand 0']
    #allocation4 [shape = 'u8[1024]{0}', space=vmem, size = 0x400, scoped, tag = 'output window, operand 0']
    #allocation5 [shape = 's32[2]{0}', space=sflag, size = 0x8, scoped, tag = 'scoped memory for tpu_custom_call.1']
    %18 = vsyncpa [#allocation5], 0
    %s19 = scalar_lea.sflag [#allocation5], 1
    %20 = vsyncpa %s19, 0
    loop: start=0, step=1, limit=4
    $region2: #{tpu_custom_call.1} parent=1 // loop_pre_header
      _
    $region3: #{tpu_custom_call.1} parent=1 // loop_header
      %s22 = sphi 0, %s26
      %p23 = scmp.ge.s32.totalorder %s22, 4
      %s32 = sphi 0, %s34
      %s35 = sphi 0, %s32
      %s36 = sphi 0, %s35
      %s52 = sphi 0, %s36
      %s56 = sphi 0, %s56
      %s58 = sphi 0, %s56
      %s59 = sphi 0, %s58
      %s73 = sphi 0, %s59
      %s77 = sphi 0, %s77
      %s79 = sphi 0, %s77
      %s80 = sphi 0, %s79
      %s94 = sphi 0, %s80
      %s98 = sphi 0, %s98
      %s100 = sphi 0, %s98
      %s101 = sphi 0, %s100
      %s115 = sphi 0, %s101
      %s119 = sphi 0, %s119
      %s121 = sphi 0, %s119
      %s122 = sphi 0, %s121
      %s136 = sphi 0, %s122
      %s140 = sphi 0, %s140
      %s142 = sphi 0, %s140
      %s143 = sphi 0, %s142
      %s157 = sphi 0, %s143
      %s161 = sphi 0, %s161
      %s163 = sphi 0, %s161
      %s164 = sphi 0, %s163
      %s178 = sphi 0, %s164
      %s182 = sphi 0, %s182
      %s184 = sphi 0, %s182
      %s185 = sphi 0, %s184
      %s199 = sphi 0, %s185
      %s203 = sphi 0, %s203
      %s205 = sphi 0, %s203
      %s206 = sphi 0, %s205
      %s220 = sphi 0, %s206
      %s224 = sphi 0, %s224
      %s226 = sphi 0, %s224
      %s227 = sphi 0, %s226
      %s241 = sphi 0, %s227
      %s245 = sphi 0, %s245
      %s247 = sphi 0, %s245
      %s248 = sphi 0, %s247
      %s262 = sphi 0, %s248
      %s268 = sphi 0, %s270
      %s271 = sphi 0, %s268
      %s272 = sphi 0, %s271
      %s288 = sphi 0, %s272
    $region4: #{tpu_custom_call.1} parent=1 // loop_header_branch
      %25 = sbr.rel (%p23) target = $region8
    $region5: #{tpu_custom_call.1} parent=1 // loop_body
      %s27 = ssub.s32 %s22, 1
      %s28 = ssub.s32 %s22, 2
      %s29 = sadd.s32 %s22, 1
      %s30 = ssub.s32 %s22, %s29
      %p31 = scmp.eq.s32.totalorder %s30, 0
      %s33 = sadd.s32 %s32, 1
      %s34 = scalar_select %p31, %s32, %s33
      %p37 = pneg %p31
      %p38 = scmp.eq.s32.totalorder %s22, 1
      %p39 = por %p37, %p38
      %p40 = scmp.ne.s32.totalorder %s32, %s35
      %p41 = scmp.eq.s32.totalorder %s22, 0
      %p42 = por %p40, %p41
      %p43 = scmp.ne.s32.totalorder %s32, %s35
      %p44 = scmp.eq.s32.totalorder %s27, 1
      %p45 = por %p43, %p44
      %p46 = scmp.ne.s32.totalorder %s35, %s36
      %p47 = scmp.eq.s32.totalorder %s27, 0
      %p48 = por %p46, %p47
      %p49 = scmp.ne.s32.totalorder %s35, %s36
      %p50 = scmp.eq.s32.totalorder %s28, 1
      %p51 = por %p49, %p50
      %p53 = scmp.ne.s32.totalorder %s36, %s52
      %p54 = scmp.eq.s32.totalorder %s28, 0
      %p55 = por %p53, %p54
      %s57 = sadd.s32 %s56, 1
      %p60 = scmp.eq.s32.totalorder %s22, 1
      %p61 = scmp.ne.s32.totalorder %s56, %s58
      %p62 = scmp.eq.s32.totalorder %s22, 0
      %p63 = por %p61, %p62
      %p64 = scmp.ne.s32.totalorder %s56, %s58
      %p65 = scmp.eq.s32.totalorder %s27, 1
      %p66 = por %p64, %p65
      %p67 = scmp.ne.s32.totalorder %s58, %s59
      %p68 = scmp.eq.s32.totalorder %s27, 0
      %p69 = por %p67, %p68
      %p70 = scmp.ne.s32.totalorder %s58, %s59
      %p71 = scmp.eq.s32.totalorder %s28, 1
      %p72 = por %p70, %p71
      %p74 = scmp.ne.s32.totalorder %s59, %s73
      %p75 = scmp.eq.s32.totalorder %s28, 0
      %p76 = por %p74, %p75
      %s78 = sadd.s32 %s77, 1
      %p81 = scmp.eq.s32.totalorder %s22, 1
      %p82 = scmp.ne.s32.totalorder %s77, %s79
      %p83 = scmp.eq.s32.totalorder %s22, 0
      %p84 = por %p82, %p83
      %p85 = scmp.ne.s32.totalorder %s77, %s79
      %p86 = scmp.eq.s32.totalorder %s27, 1
      %p87 = por %p85, %p86
      %p88 = scmp.ne.s32.totalorder %s79, %s80
      %p89 = scmp.eq.s32.totalorder %s27, 0
      %p90 = por %p88, %p89
      %p91 = scmp.ne.s32.totalorder %s79, %s80
      %p92 = scmp.eq.s32.totalorder %s28, 1
      %p93 = por %p91, %p92
      %p95 = scmp.ne.s32.totalorder %s80, %s94
      %p96 = scmp.eq.s32.totalorder %s28, 0
      %p97 = por %p95, %p96
      %s99 = sadd.s32 %s98, 1
      %p102 = scmp.eq.s32.totalorder %s22, 1
      %p103 = scmp.ne.s32.totalorder %s98, %s100
      %p104 = scmp.eq.s32.totalorder %s22, 0
      %p105 = por %p103, %p104
      %p106 = scmp.ne.s32.totalorder %s98, %s100
      %p107 = scmp.eq.s32.totalorder %s27, 1
      %p108 = por %p106, %p107
      %p109 = scmp.ne.s32.totalorder %s100, %s101
      %p110 = scmp.eq.s32.totalorder %s27, 0
      %p111 = por %p109, %p110
      %p112 = scmp.ne.s32.totalorder %s100, %s101
      %p113 = scmp.eq.s32.totalorder %s28, 1
      %p114 = por %p112, %p113
      %p116 = scmp.ne.s32.totalorder %s101, %s115
      %p117 = scmp.eq.s32.totalorder %s28, 0
      %p118 = por %p116, %p117
      %s120 = sadd.s32 %s119, 1
      %p123 = scmp.eq.s32.totalorder %s22, 1
      %p124 = scmp.ne.s32.totalorder %s119, %s121
      %p125 = scmp.eq.s32.totalorder %s22, 0
      %p126 = por %p124, %p125
      %p127 = scmp.ne.s32.totalorder %s119, %s121
      %p128 = scmp.eq.s32.totalorder %s27, 1
      %p129 = por %p127, %p128
      %p130 = scmp.ne.s32.totalorder %s121, %s122
      %p131 = scmp.eq.s32.totalorder %s27, 0
      %p132 = por %p130, %p131
      %p133 = scmp.ne.s32.totalorder %s121, %s122
      %p134 = scmp.eq.s32.totalorder %s28, 1
      %p135 = por %p133, %p134
      %p137 = scmp.ne.s32.totalorder %s122, %s136
      %p138 = scmp.eq.s32.totalorder %s28, 0
      %p139 = por %p137, %p138
      %s141 = sadd.s32 %s140, 1
      %p144 = scmp.eq.s32.totalorder %s22, 1
      %p145 = scmp.ne.s32.totalorder %s140, %s142
      %p146 = scmp.eq.s32.totalorder %s22, 0
      %p147 = por %p145, %p146
      %p148 = scmp.ne.s32.totalorder %s140, %s142
      %p149 = scmp.eq.s32.totalorder %s27, 1
      %p150 = por %p148, %p149
      %p151 = scmp.ne.s32.totalorder %s142, %s143
      %p152 = scmp.eq.s32.totalorder %s27, 0
      %p153 = por %p151, %p152
      %p154 = scmp.ne.s32.totalorder %s142, %s143
      %p155 = scmp.eq.s32.totalorder %s28, 1
      %p156 = por %p154, %p155
      %p158 = scmp.ne.s32.totalorder %s143, %s157
      %p159 = scmp.eq.s32.totalorder %s28, 0
      %p160 = por %p158, %p159
      %s162 = sadd.s32 %s161, 1
      %p165 = scmp.eq.s32.totalorder %s22, 1
      %p166 = scmp.ne.s32.totalorder %s161, %s163
      %p167 = scmp.eq.s32.totalorder %s22, 0
      %p168 = por %p166, %p167
      %p169 = scmp.ne.s32.totalorder %s161, %s163
      %p170 = scmp.eq.s32.totalorder %s27, 1
      %p171 = por %p169, %p170
      %p172 = scmp.ne.s32.totalorder %s163, %s164
      %p173 = scmp.eq.s32.totalorder %s27, 0
      %p174 = por %p172, %p173
      %p175 = scmp.ne.s32.totalorder %s163, %s164
      %p176 = scmp.eq.s32.totalorder %s28, 1
      %p177 = por %p175, %p176
      %p179 = scmp.ne.s32.totalorder %s164, %s178
      %p180 = scmp.eq.s32.totalorder %s28, 0
      %p181 = por %p179, %p180
      %s183 = sadd.s32 %s182, 1
      %p186 = scmp.eq.s32.totalorder %s22, 1
      %p187 = scmp.ne.s32.totalorder %s182, %s184
      %p188 = scmp.eq.s32.totalorder %s22, 0
      %p189 = por %p187, %p188
      %p190 = scmp.ne.s32.totalorder %s182, %s184
      %p191 = scmp.eq.s32.totalorder %s27, 1
      %p192 = por %p190, %p191
      %p193 = scmp.ne.s32.totalorder %s184, %s185
      %p194 = scmp.eq.s32.totalorder %s27, 0
      %p195 = por %p193, %p194
      %p196 = scmp.ne.s32.totalorder %s184, %s185
      %p197 = scmp.eq.s32.totalorder %s28, 1
      %p198 = por %p196, %p197
      %p200 = scmp.ne.s32.totalorder %s185, %s199
      %p201 = scmp.eq.s32.totalorder %s28, 0
      %p202 = por %p200, %p201
      %s204 = sadd.s32 %s203, 1
      %p207 = scmp.eq.s32.totalorder %s22, 1
      %p208 = scmp.ne.s32.totalorder %s203, %s205
      %p209 = scmp.eq.s32.totalorder %s22, 0
      %p210 = por %p208, %p209
      %p211 = scmp.ne.s32.totalorder %s203, %s205
      %p212 = scmp.eq.s32.totalorder %s27, 1
      %p213 = por %p211, %p212
      %p214 = scmp.ne.s32.totalorder %s205, %s206
      %p215 = scmp.eq.s32.totalorder %s27, 0
      %p216 = por %p214, %p215
      %p217 = scmp.ne.s32.totalorder %s205, %s206
      %p218 = scmp.eq.s32.totalorder %s28, 1
      %p219 = por %p217, %p218
      %p221 = scmp.ne.s32.totalorder %s206, %s220
      %p222 = scmp.eq.s32.totalorder %s28, 0
      %p223 = por %p221, %p222
      %s225 = sadd.s32 %s224, 1
      %p228 = scmp.eq.s32.totalorder %s22, 1
      %p229 = scmp.ne.s32.totalorder %s224, %s226
      %p230 = scmp.eq.s32.totalorder %s22, 0
      %p231 = por %p229, %p230
      %p232 = scmp.ne.s32.totalorder %s224, %s226
      %p233 = scmp.eq.s32.totalorder %s27, 1
      %p234 = por %p232, %p233
      %p235 = scmp.ne.s32.totalorder %s226, %s227
      %p236 = scmp.eq.s32.totalorder %s27, 0
      %p237 = por %p235, %p236
      %p238 = scmp.ne.s32.totalorder %s226, %s227
      %p239 = scmp.eq.s32.totalorder %s28, 1
      %p240 = por %p238, %p239
      %p242 = scmp.ne.s32.totalorder %s227, %s241
      %p243 = scmp.eq.s32.totalorder %s28, 0
      %p244 = por %p242, %p243
      %s246 = sadd.s32 %s245, 1
      %p249 = scmp.eq.s32.totalorder %s22, 1
      %p250 = scmp.ne.s32.totalorder %s245, %s247
      %p251 = scmp.eq.s32.totalorder %s22, 0
      %p252 = por %p250, %p251
      %p253 = scmp.ne.s32.totalorder %s245, %s247
      %p254 = scmp.eq.s32.totalorder %s27, 1
      %p255 = por %p253, %p254
      %p256 = scmp.ne.s32.totalorder %s247, %s248
      %p257 = scmp.eq.s32.totalorder %s27, 0
      %p258 = por %p256, %p257
      %p259 = scmp.ne.s32.totalorder %s247, %s248
      %p260 = scmp.eq.s32.totalorder %s28, 1
      %p261 = por %p259, %p260
      %p263 = scmp.ne.s32.totalorder %s248, %s262
      %p264 = scmp.eq.s32.totalorder %s28, 0
      %p265 = por %p263, %p264
      %s266 = ssub.s32 %s22, %s29
      %p267 = scmp.eq.s32.totalorder %s266, 0
      %s269 = sadd.s32 %s268, 1
      %s270 = scalar_select %p267, %s268, %s269
      %p273 = pneg %p267
      %p274 = scmp.eq.s32.totalorder %s22, 1
      %p275 = por %p273, %p274
      %p276 = scmp.ne.s32.totalorder %s268, %s271
      %p277 = scmp.eq.s32.totalorder %s22, 0
      %p278 = por %p276, %p277
      %p279 = scmp.ne.s32.totalorder %s268, %s271
      %p280 = scmp.eq.s32.totalorder %s27, 1
      %p281 = por %p279, %p280
      %p282 = scmp.ne.s32.totalorder %s271, %s272
      %p283 = scmp.eq.s32.totalorder %s27, 0
      %p284 = por %p282, %p283
      %p285 = scmp.ne.s32.totalorder %s271, %s272
      %p286 = scmp.eq.s32.totalorder %s28, 1
      %p287 = por %p285, %p286
      %p289 = scmp.ne.s32.totalorder %s272, %s288
      %p290 = scmp.eq.s32.totalorder %s28, 0
      %p291 = por %p289, %p290
      %p292 = scmp.le.s32.totalorder 1, %s22
      %p293 = scmp.lt.s32.totalorder %s22, 3
      %p294 = pnand %p292, %p293
      %p295 = pneg %p294
      // Predicated region
      $region9: #{tpu_custom_call.1} parent=5 // pred_check
        _
      $region10: #{tpu_custom_call.1} parent=5 // pred_check_branch
        %297 = sbr.rel (%p294) target = $region12
      $region11: #{tpu_custom_call.1} parent=5 // pred_region
        %s298 = ssub.s32 %s22, 1
        // Predicated region
        $region13: #{tpu_custom_call.1} parent=11 // pred_check
          %p299 = pneg %p69
        $region14: #{tpu_custom_call.1} parent=11 // pred_check_branch
          %301 = sbr.rel (%p299) target = $region16
        $region15: #{tpu_custom_call.1} parent=11 // pred_region
          _
        $region16: #{tpu_custom_call.1} parent=11 // pred_fallthru
          _
        // Predicated region
        $region17: #{tpu_custom_call.1} parent=11 // pred_check
          %p302 = pneg %p90
        $region18: #{tpu_custom_call.1} parent=11 // pred_check_branch
          %304 = sbr.rel (%p302) target = $region20
        $region19: #{tpu_custom_call.1} parent=11 // pred_region
          _
        $region20: #{tpu_custom_call.1} parent=11 // pred_fallthru
          _
        // Predicated region
        $region21: #{tpu_custom_call.1} parent=11 // pred_check
          %p305 = pneg %p111
        $region22: #{tpu_custom_call.1} parent=11 // pred_check_branch
          %307 = sbr.rel (%p305) target = $region24
        $region23: #{tpu_custom_call.1} parent=11 // pred_region
          _
        $region24: #{tpu_custom_call.1} parent=11 // pred_fallthru
          _
        // Predicated region
        $region25: #{tpu_custom_call.1} parent=11 // pred_check
          %p308 = pneg %p132
        $region26: #{tpu_custom_call.1} parent=11 // pred_check_branch
          %310 = sbr.rel (%p308) target = $region28
        $region27: #{tpu_custom_call.1} parent=11 // pred_region
          _
        $region28: #{tpu_custom_call.1} parent=11 // pred_fallthru
          _
        // Predicated region
        $region29: #{tpu_custom_call.1} parent=11 // pred_check
          %p311 = pneg %p153
        $region30: #{tpu_custom_call.1} parent=11 // pred_check_branch
          %313 = sbr.rel (%p311) target = $region32
        $region31: #{tpu_custom_call.1} parent=11 // pred_region
          _
        $region32: #{tpu_custom_call.1} parent=11 // pred_fallthru
          _
        // Predicated region
        $region33: #{tpu_custom_call.1} parent=11 // pred_check
          %p314 = pneg %p174
        $region34: #{tpu_custom_call.1} parent=11 // pred_check_branch
          %316 = sbr.rel (%p314) target = $region36
        $region35: #{tpu_custom_call.1} parent=11 // pred_region
          _
        $region36: #{tpu_custom_call.1} parent=11 // pred_fallthru
          _
        // Predicated region
        $region37: #{tpu_custom_call.1} parent=11 // pred_check
          %p317 = pneg %p195
        $region38: #{tpu_custom_call.1} parent=11 // pred_check_branch
          %319 = sbr.rel (%p317) target = $region40
        $region39: #{tpu_custom_call.1} parent=11 // pred_region
          _
        $region40: #{tpu_custom_call.1} parent=11 // pred_fallthru
          _
        // Predicated region
        $region41: #{tpu_custom_call.1} parent=11 // pred_check
          %p320 = pneg %p216
        $region42: #{tpu_custom_call.1} parent=11 // pred_check_branch
          %322 = sbr.rel (%p320) target = $region44
        $region43: #{tpu_custom_call.1} parent=11 // pred_region
          _
        $region44: #{tpu_custom_call.1} parent=11 // pred_fallthru
          _
        // Predicated region
        $region45: #{tpu_custom_call.1} parent=11 // pred_check
          %p323 = pneg %p237
        $region46: #{tpu_custom_call.1} parent=11 // pred_check_branch
          %325 = sbr.rel (%p323) target = $region48
        $region47: #{tpu_custom_call.1} parent=11 // pred_region
          _
        $region48: #{tpu_custom_call.1} parent=11 // pred_fallthru
          _
        // Predicated region
        $region49: #{tpu_custom_call.1} parent=11 // pred_check
          %p326 = pneg %p258
        $region50: #{tpu_custom_call.1} parent=11 // pred_check_branch
          %328 = sbr.rel (%p326) target = $region52
        $region51: #{tpu_custom_call.1} parent=11 // pred_region
          _
        $region52: #{tpu_custom_call.1} parent=11 // pred_fallthru
          _
      $region12: #{tpu_custom_call.1} parent=5 // pred_fallthru
        _
      %p329 = scmp.lt.s32.totalorder %s22, 2
      // Predicated region
      $region53: #{tpu_custom_call.1} parent=5 // pred_check
        %p330 = pneg %p329
      $region54: #{tpu_custom_call.1} parent=5 // pred_check_branch
        %332 = sbr.rel (%p330) target = $region56
      $region55: #{tpu_custom_call.1} parent=5 // pred_region
        // Predicated region
        $region57: #{tpu_custom_call.1} parent=55 // pred_check
          %p333 = pneg %p42
        $region58: #{tpu_custom_call.1} parent=55 // pred_check_branch
          %335 = sbr.rel (%p333) target = $region60
        $region59: #{tpu_custom_call.1} parent=55 // pred_region
          %s336 = sand.u32 %s32, 1
          %s337 = sand.u32 %s32, 1
          %s338 = smul.addr %s337, 24
          %s339 = scalar_lea.vmem [#allocation3], %s338
          %s340 = smul.addr %s22, 4
          %s341 = scalar_lea.vmem %s0, %s340
          // Predicated region
          $region61: #{tpu_custom_call.1} parent=59 // pred_check
            _
          $region62: #{tpu_custom_call.1} parent=59 // pred_check_branch
            %343 = sbr.rel (0) target = $region64
          $region63: #{tpu_custom_call.1} parent=59 // pred_region
            // Predicated region
            $region65: #{tpu_custom_call.1} parent=63 // pred_check
              _
            $region66: #{tpu_custom_call.1} parent=63 // pred_check_branch
              %345 = sbr.rel target = $region68
            $region67: #{tpu_custom_call.1} parent=63 // pred_region
              // Predicated region
              $region80: #{tpu_custom_call.1} parent=67 // pred_check
                _
              $region81: #{tpu_custom_call.1} parent=67 // pred_check_branch
                %370 = sbr.rel (0) target = $region83
              $region82: #{tpu_custom_call.1} parent=67 // pred_region
                loop: start=0, step=1, limit=1
                $region84: #{tpu_custom_call.1} parent=82 // loop_pre_header
                  _
                $region85: #{tpu_custom_call.1} parent=82 // loop_header
                  %s372 = sphi 0, %s376
                  %p373 = scmp.ge.s32.totalorder %s372, 1
                  %s377 = sphi %s341, %s341
                  %s378 = sphi %s339, %s339
                $region86: #{tpu_custom_call.1} parent=82 // loop_header_branch
                  %375 = sbr.rel (%p373) target = $region90
                $region87: #{tpu_custom_call.1} parent=82 // loop_body
                  _
                $region88: #{tpu_custom_call.1} parent=82 // loop_footer
                  %s376 = sadd.s32 1, %s372
                $region89: #{tpu_custom_call.1} parent=82 // loop_footer_branch
                  %371 = sbr.rel target = $region85
                $region90: #{tpu_custom_call.1} parent=82 // loop_exit
                  _
                loop: start=0, step=1, limit=1
                $region91: #{tpu_custom_call.1} parent=82 // loop_pre_header
                  _
                $region92: #{tpu_custom_call.1} parent=82 // loop_header
                  %s381 = sphi 0, %s385
                  %p382 = scmp.ge.s32.totalorder %s381, 1
                  %s386 = sphi %s341, %s341
                  %s387 = sphi %s339, %s339
                $region93: #{tpu_custom_call.1} parent=82 // loop_header_branch
                  %384 = sbr.rel (%p382) target = $region97
                $region94: #{tpu_custom_call.1} parent=82 // loop_body
                  %v388 = vld [vmem:[%s386] sm:$0xf]
                  %389 = vst [vmem:[%s387] sm:$0xf] %v388
                  %v390 = vld [vmem:[%s386 + $0x8] sm:$0xf]
                  %391 = vst [vmem:[%s387 + $0x4] sm:$0xf] %v390
                  %v392 = vld [vmem:[%s386 + $0x10] sm:$0xf]
                  %393 = vst [vmem:[%s387 + $0x8] sm:$0xf] %v392
                  %v394 = vld [vmem:[%s386 + $0x18] sm:$0xf]
                  %395 = vst [vmem:[%s387 + $0xc] sm:$0xf] %v394
                  %v396 = vld [vmem:[%s386 + $0x20] sm:$0xf]
                  %397 = vst [vmem:[%s387 + $0x10] sm:$0xf] %v396
                  %v398 = vld [vmem:[%s386 + $0x28] sm:$0xf]
                  %399 = vst [vmem:[%s387 + $0x14] sm:$0xf] %v398
                $region95: #{tpu_custom_call.1} parent=82 // loop_footer
                  %s385 = sadd.s32 1, %s381
                $region96: #{tpu_custom_call.1} parent=82 // loop_footer_branch
                  %380 = sbr.rel target = $region92
                $region97: #{tpu_custom_call.1} parent=82 // loop_exit
                  _
              $region83: #{tpu_custom_call.1} parent=67 // pred_fallthru
                _
            $region68: #{tpu_custom_call.1} parent=63 // pred_fallthru
              _
            // Predicated region
            $region69: #{tpu_custom_call.1} parent=63 // pred_check
              _
            $region70: #{tpu_custom_call.1} parent=63 // pred_check_branch
              %347 = sbr.rel (0) target = $region72
            $region71: #{tpu_custom_call.1} parent=63 // pred_region
              loop: start=0, step=1, limit=1
              $region73: #{tpu_custom_call.1} parent=71 // loop_pre_header
                _
              $region74: #{tpu_custom_call.1} parent=71 // loop_header
                %s350 = sphi 0, %s354
                %p351 = scmp.ge.s32.totalorder %s350, 1
                %s355 = sphi %s341, %s341
                %s356 = sphi %s339, %s339
              $region75: #{tpu_custom_call.1} parent=71 // loop_header_branch
                %353 = sbr.rel (%p351) target = $region79
              $region76: #{tpu_custom_call.1} parent=71 // loop_body
                %v357 = vld [vmem:[%s355] sm:$0xf]
                %358 = vst [vmem:[%s356] sm:$0xf] %v357
                %v359 = vld [vmem:[%s355 + $0x8] sm:$0xf]
                %360 = vst [vmem:[%s356 + $0x4] sm:$0xf] %v359
                %v361 = vld [vmem:[%s355 + $0x10] sm:$0xf]
                %362 = vst [vmem:[%s356 + $0x8] sm:$0xf] %v361
                %v363 = vld [vmem:[%s355 + $0x18] sm:$0xf]
                %364 = vst [vmem:[%s356 + $0xc] sm:$0xf] %v363
                %v365 = vld [vmem:[%s355 + $0x20] sm:$0xf]
                %366 = vst [vmem:[%s356 + $0x10] sm:$0xf] %v365
                %v367 = vld [vmem:[%s355 + $0x28] sm:$0xf]
                %368 = vst [vmem:[%s356 + $0x14] sm:$0xf] %v367
              $region77: #{tpu_custom_call.1} parent=71 // loop_footer
                %s354 = sadd.s32 1, %s350
              $region78: #{tpu_custom_call.1} parent=71 // loop_footer_branch
                %349 = sbr.rel target = $region74
              $region79: #{tpu_custom_call.1} parent=71 // loop_exit
                _
            $region72: #{tpu_custom_call.1} parent=63 // pred_fallthru
              _
          $region64: #{tpu_custom_call.1} parent=59 // pred_fallthru
            _
          %400 = vnop
        $region60: #{tpu_custom_call.1} parent=55 // pred_fallthru
          _
      $region56: #{tpu_custom_call.1} parent=5 // pred_fallthru
        _
      %p401 = scmp.le.s32.totalorder 1, %s22
      %p402 = scmp.lt.s32.totalorder %s22, 3
      %p403 = pnand %p401, %p402
      %p404 = pneg %p403
      // Predicated region
      $region98: #{tpu_custom_call.1} parent=5 // pred_check
        _
      $region99: #{tpu_custom_call.1} parent=5 // pred_check_branch
        %406 = sbr.rel (%p403) target = $region101
      $region100: #{tpu_custom_call.1} parent=5 // pred_region
        %s407 = ssub.s32 %s22, 1
        %s408 = sand.u32 %s35, 1
        %s409 = sand.u32 %s35, 1
        %s410 = smul.addr %s409, 24
        %s411 = scalar_lea.vmem [#allocation3], %s410
        // Predicated region
        $region102: #{tpu_custom_call.1} parent=100 // pred_check
          %p412 = pneg %p48
        $region103: #{tpu_custom_call.1} parent=100 // pred_check_branch
          %414 = sbr.rel (%p412) target = $region105
        $region104: #{tpu_custom_call.1} parent=100 // pred_region
          _
        $region105: #{tpu_custom_call.1} parent=100 // pred_fallthru
          _
        %s415 = sand.u32 %s35, 1
        %s416 = sand.u32 %s35, 1
        %s417 = smul.addr %s416, 24
        %s418 = scalar_lea.vmem [#allocation3], %s417
        %p419 = pneg %p48
        %p420 = pneg %p45
        %p421 = pneg %p69
        %p422 = pneg %p66
        %p423 = pneg %p90
        %p424 = pneg %p87
        %p425 = pneg %p111
        %p426 = pneg %p108
        %p427 = pneg %p132
        %p428 = pneg %p129
        %p429 = pneg %p153
        %p430 = pneg %p150
        %p431 = pneg %p174
        %p432 = pneg %p171
        %p433 = pneg %p195
        %p434 = pneg %p192
        %p435 = pneg %p216
        %p436 = pneg %p213
        %p437 = pneg %p237
        %p438 = pneg %p234
        %p439 = pneg %p258
        %p440 = pneg %p255
        %p441 = pneg %p284
        %p442 = pneg %p281
        %s443 = sand.u32 %s271, 1
        %s444 = scalar_lea.sflag [#allocation5], %s443
        %s445 = sand.u32 %s271, 1
        %s446 = scalar_lea.vmem [#allocation4], %s445
        %v448 = vld [vmem:[%s411] sm:$0xf]
        %v449 = vld [vmem:[%s411 + $0x4] sm:$0xf]
        %v450 = vld [vmem:[%s411 + $0x8] sm:$0xf]
        %v451 = vld [vmem:[%s411 + $0xc] sm:$0xf]
        %v452 = vld [vmem:[%s411 + $0x10] sm:$0xf]
        %v453 = vld [vmem:[%s411 + $0x14] sm:$0x7]
        %v454 = vld [vmem:[%s1] sm:$0xf]
        %v455 = vld [vmem:[%s1 + $0x4] sm:$0xf]
        %v456 = vld [vmem:[%s1 + $0x8] sm:$0xf]
        %v457 = vld [vmem:[%s1 + $0xc] sm:$0xf]
        %v458 = vld [vmem:[%s1 + $0x10] sm:$0xf]
        %v459 = vld [vmem:[%s1 + $0x14] sm:$0xf]
        %v460 = vld [vmem:[%s1 + $0x18] sm:$0xf]
        %v461 = vld [vmem:[%s1 + $0x1c] sm:$0xf]
        %v462 = vld [vmem:[%s2] sm:$0xff]
        %v463 = vld [vmem:[%s2 + $0x8] sm:$0xff]
        %v464 = vld [vmem:[%s2 + $0x10] sm:$0xff]
        %v465 = vld [vmem:[%s2 + $0x18] sm:$0xff]
        %v466 = vld [vmem:[%s2 + $0x20] sm:$0xff]
        %v467 = vld [vmem:[%s2 + $0x28] sm:$0xff]
        %v468 = vld [vmem:[%s2 + $0x30] sm:$0xff]
        %v469 = vld [vmem:[%s2 + $0x38] sm:$0xff]
        %471 = vset.pattern.permute.xlu0 0
        %472 = vperm.xlu0 %471, %v462
        %v473 = vpop.permute.xlu0 %472
        %476 = vset.pattern.permute.xlu0 0
        %477 = vperm.xlu0 %476, %v463
        %v478 = vpop.permute.xlu0 %477
        %481 = vset.pattern.permute.xlu0 0
        %482 = vperm.xlu0 %481, %v464
        %v483 = vpop.permute.xlu0 %482
        %486 = vset.pattern.permute.xlu0 0
        %487 = vperm.xlu0 %486, %v465
        %v488 = vpop.permute.xlu0 %487
        %491 = vset.pattern.permute.xlu0 0
        %492 = vperm.xlu0 %491, %v466
        %v493 = vpop.permute.xlu0 %492
        %496 = vset.pattern.permute.xlu0 0
        %497 = vperm.xlu0 %496, %v467
        %v498 = vpop.permute.xlu0 %497
        %501 = vset.pattern.permute.xlu0 0
        %502 = vperm.xlu0 %501, %v468
        %v503 = vpop.permute.xlu0 %502
        %506 = vset.pattern.permute.xlu0 0
        %507 = vperm.xlu0 %506, %v469
        %v508 = vpop.permute.xlu0 %507
        %v518 = vunpack.c.l.b16 %v454
        %v519 = vunpack.c.l.b16 %v455
        %v520 = vunpack.c.l.b16 %v456
        %v521 = vunpack.c.l.b16 %v457
        %v522 = vunpack.c.l.b16 %v458
        %v523 = vunpack.c.l.b16 %v459
        %v524 = vunpack.c.l.b16 %v460
        %v525 = vunpack.c.l.b16 %v461
        %v526 = vpack.c.b16 %v519, %v518
        %v527 = vpack.c.b16 %v521, %v520
        %v528 = vpack.c.b16 %v523, %v522
        %v529 = vpack.c.b16 %v525, %v524
        %v536 = vunpack.c.l.b16 %v448
        %v537 = vunpack.c.l.b16 %v449
        %v538 = vunpack.c.l.b16 %v450
        %v539 = vunpack.c.l.b16 %v451
        %v540 = vunpack.c.l.b16 %v452
        %v541 = vunpack.c.l.b16 %v453
        %v542 = vpack.c.b16 %v537, %v536
        %v543 = vpack.c.b16 %v539, %v538
        %v544 = vpack.c.b16 %v541, %v540
        %vm547 = vcmask 367616
        %v549 = vsel %vm547, %v526, 0
        %v552 = vsel %vm547, %v527, 0
        %v555 = vsel %vm547, %v528, 0
        %v558 = vsel %vm547, %v529, 0
        %vm560 = vcmask 1045504
        %vm561 = vcmask 1046528
        %v562 = vsel %vm560, 4294967295, 65535
        %v563 = vsel %vm561, %v562, 0
        %v565 = vand.u32 %v544, %v563
        %567 = vmatprep.subr.bf16.mxu0 0
        %568 = vmatpush1.bf16.msra.mxu0 %v542
        %569 = vmatprep.subr.bf16.mxu0 0
        %570 = vmatpush1.bf16.msra.mxu0 %v543
        %571 = vmatprep.subr.bf16.mxu0 0
        %572 = vmatpush1.bf16.msra.mxu0 %v565
        %573 = vmatprep.subr.bf16.mxu0 0
        %574 = vmatpush1.bf16.msra.mxu0 0
        %575 = vmatprep.subr.bf16.mxu0 0
        %576 = vmatpush1.bf16.msra.mxu0 0
        %577 = vmatprep.subr.bf16.mxu0 0
        %578 = vmatpush1.bf16.msra.mxu0 0
        %579 = vmatprep.subr.bf16.mxu0 0
        %580 = vmatpush1.bf16.msra.mxu0 0
        %581 = vmatprep.subr.bf16.mxu0 0
        %582 = vmatpush1.bf16.msra.mxu0 0
        %583 = vmatprep.subr.bf16.mxu0 0
        %584 = vmatpush1.bf16.msra.mxu0 0
        %585 = vmatprep.subr.bf16.mxu0 0
        %586 = vmatpush1.bf16.msra.mxu0 0
        %587 = vmatprep.subr.bf16.mxu0 0
        %588 = vmatpush1.bf16.msra.mxu0 0
        %589 = vmatprep.subr.bf16.mxu0 0
        %590 = vmatpush1.bf16.msra.mxu0 0
        %591 = vmatprep.subr.bf16.mxu0 0
        %592 = vmatpush1.bf16.msra.mxu0 0
        %593 = vmatprep.subr.bf16.mxu0 0
        %594 = vmatpush1.bf16.msra.mxu0 0
        %595 = vmatprep.subr.bf16.mxu0 0
        %596 = vmatpush1.bf16.msra.mxu0 0
        %597 = vmatprep.subr.bf16.mxu0 0
        %598 = vmatpush1.bf16.msra.mxu0 0
        %599 = vmatprep.mubr.bf16.mxu0 0
        %600 = vmatmul.mubr.bf16.gmra.mrb[0].mxu0 %v549
        %v601 = vpop.f32.mrb[0].mxu0
        %v602 = vadd.f32 %v473, %v601
        %v603 = vpop.f32.mrb[0].mxu0
        %v604 = vpop.f32.mrb[0].mxu0
        %v605 = vadd.f32 %v478, %v604
        %v606 = vpop.f32.mrb[0].mxu0
        %607 = vmatprep.mubr.bf16.mxu0 0
        %608 = vmatmul.mubr.bf16.gmra.mrb[0].mxu0 %v552
        %v609 = vpop.f32.mrb[0].mxu0
        %v610 = vadd.f32 %v483, %v609
        %v611 = vpop.f32.mrb[0].mxu0
        %v612 = vpop.f32.mrb[0].mxu0
        %v613 = vadd.f32 %v488, %v612
        %v614 = vpop.f32.mrb[0].mxu0
        %615 = vmatprep.mubr.bf16.mxu0 0
        %616 = vmatmul.mubr.bf16.gmra.mrb[0].mxu0 %v555
        %v617 = vpop.f32.mrb[0].mxu0
        %v618 = vadd.f32 %v493, %v617
        %v619 = vpop.f32.mrb[0].mxu0
        %v620 = vpop.f32.mrb[0].mxu0
        %v621 = vadd.f32 %v498, %v620
        %v622 = vpop.f32.mrb[0].mxu0
        %623 = vmatprep.mubr.bf16.mxu0 0
        %624 = vmatmul.mubr.bf16.gmra.mrb[0].mxu0 %v558
        %v625 = vpop.f32.mrb[0].mxu0
        %v626 = vadd.f32 %v503, %v625
        %v627 = vpop.f32.mrb[0].mxu0
        %v628 = vpop.f32.mrb[0].mxu0
        %v629 = vadd.f32 %v508, %v628
        %v630 = vpop.f32.mrb[0].mxu0
        %631 = vdwg.mxu0
        %v632 = vmax.f32 %v602, 0.0
        %v633 = vmax.f32 %v605, 0.0
        %v634 = vmax.f32 %v610, 0.0
        %v635 = vmax.f32 %v613, 0.0
        %v636 = vmax.f32 %v618, 0.0
        %v637 = vmax.f32 %v621, 0.0
        %v638 = vmax.f32 %v626, 0.0
        %v639 = vmax.f32 %v629, 0.0
        %v640 = vpack.c.bf16 %v633, %v632
        %v641 = vpack.c.bf16 %v635, %v634
        %v642 = vpack.c.bf16 %v637, %v636
        %v643 = vpack.c.bf16 %v639, %v638
        %v644 = vld [vmem:[%s3] sm:$0xf]
        %v645 = vld [vmem:[%s3 + $0x4] sm:$0xf]
        %v646 = vld [vmem:[%s3 + $0x8] sm:$0xf]
        %v647 = vld [vmem:[%s3 + $0xc] sm:$0xf]
        %v648 = vld [vmem:[%s3 + $0x10] sm:$0xf]
        %v649 = vld [vmem:[%s3 + $0x14] sm:$0xf]
        %v650 = vld [vmem:[%s3 + $0x18] sm:$0xf]
        %v651 = vld [vmem:[%s3 + $0x1c] sm:$0xf]
        %v652 = vld [vmem:[%s3 + $0x20] sm:$0xf]
        %v653 = vld [vmem:[%s3 + $0x24] sm:$0xf]
        %v654 = vld [vmem:[%s3 + $0x28] sm:$0xf]
        %v655 = vld [vmem:[%s3 + $0x2c] sm:$0xf]
        %v656 = vld [vmem:[%s3 + $0x30] sm:$0xf]
        %v657 = vld [vmem:[%s3 + $0x34] sm:$0xf]
        %v658 = vld [vmem:[%s3 + $0x38] sm:$0xf]
        %v659 = vld [vmem:[%s3 + $0x3c] sm:$0xf]
        %v660 = vld [vmem:[%s3 + $0x40] sm:$0xf]
        %v661 = vld [vmem:[%s3 + $0x44] sm:$0xf]
        %v662 = vld [vmem:[%s3 + $0x48] sm:$0xf]
        %v663 = vld [vmem:[%s3 + $0x4c] sm:$0xf]
        %v664 = vld [vmem:[%s3 + $0x50] sm:$0xf]
        %v665 = vld [vmem:[%s3 + $0x54] sm:$0xf]
        %v666 = vld [vmem:[%s3 + $0x58] sm:$0xf]
        %v667 = vld [vmem:[%s3 + $0x5c] sm:$0xf]
        %v668 = vld [vmem:[%s3 + $0x60] sm:$0xf]
        %v669 = vld [vmem:[%s3 + $0x64] sm:$0xf]
        %v670 = vld [vmem:[%s3 + $0x68] sm:$0xf]
        %v671 = vld [vmem:[%s3 + $0x6c] sm:$0xf]
        %v672 = vld [vmem:[%s3 + $0x70] sm:$0xf]
        %v673 = vld [vmem:[%s3 + $0x74] sm:$0xf]
        %v674 = vld [vmem:[%s3 + $0x78] sm:$0xf]
        %v675 = vld [vmem:[%s3 + $0x7c] sm:$0xf]
        %v676 = vld [vmem:[%s4] sm:$0xff]
        %v677 = vld [vmem:[%s4 + $0x8] sm:$0xff]
        %v678 = vld [vmem:[%s4 + $0x10] sm:$0xff]
        %v679 = vld [vmem:[%s4 + $0x18] sm:$0xff]
        %v680 = vld [vmem:[%s4 + $0x20] sm:$0xff]
        %v681 = vld [vmem:[%s4 + $0x28] sm:$0xff]
        %v682 = vld [vmem:[%s4 + $0x30] sm:$0xff]
        %v683 = vld [vmem:[%s4 + $0x38] sm:$0xff]
        %v684 = vld [vmem:[%s4 + $0x40] sm:$0xff]
        %v685 = vld [vmem:[%s4 + $0x48] sm:$0xff]
        %v686 = vld [vmem:[%s4 + $0x50] sm:$0xff]
        %v687 = vld [vmem:[%s4 + $0x58] sm:$0xff]
        %v688 = vld [vmem:[%s4 + $0x60] sm:$0xff]
        %v689 = vld [vmem:[%s4 + $0x68] sm:$0xff]
        %v690 = vld [vmem:[%s4 + $0x70] sm:$0xff]
        %v691 = vld [vmem:[%s4 + $0x78] sm:$0xff]
        %v692 = vld [vmem:[%s4 + $0x80] sm:$0xff]
        %v693 = vld [vmem:[%s4 + $0x88] sm:$0xff]
        %v694 = vld [vmem:[%s4 + $0x90] sm:$0xff]
        %v695 = vld [vmem:[%s4 + $0x98] sm:$0xff]
        %v696 = vld [vmem:[%s4 + $0xa0] sm:$0xff]
        %v697 = vld [vmem:[%s4 + $0xa8] sm:$0xff]
        %v698 = vld [vmem:[%s4 + $0xb0] sm:$0xff]
        %v699 = vld [vmem:[%s4 + $0xb8] sm:$0xff]
        %v700 = vld [vmem:[%s4 + $0xc0] sm:$0xff]
        %v701 = vld [vmem:[%s4 + $0xc8] sm:$0xff]
        %v702 = vld [vmem:[%s4 + $0xd0] sm:$0xff]
        %v703 = vld [vmem:[%s4 + $0xd8] sm:$0xff]
        %v704 = vld [vmem:[%s4 + $0xe0] sm:$0xff]
        %v705 = vld [vmem:[%s4 + $0xe8] sm:$0xff]
        %v706 = vld [vmem:[%s4 + $0xf0] sm:$0xff]
        %v707 = vld [vmem:[%s4 + $0xf8] sm:$0xff]
        %709 = vset.pattern.permute.xlu0 0
        %710 = vperm.xlu0 %709, %v676
        %v711 = vpop.permute.xlu0 %710
        %714 = vset.pattern.permute.xlu0 0
        %715 = vperm.xlu0 %714, %v677
        %v716 = vpop.permute.xlu0 %715
        %719 = vset.pattern.permute.xlu0 0
        %720 = vperm.xlu0 %719, %v678
        %v721 = vpop.permute.xlu0 %720
        %724 = vset.pattern.permute.xlu0 0
        %725 = vperm.xlu0 %724, %v679
        %v726 = vpop.permute.xlu0 %725
        %729 = vset.pattern.permute.xlu0 0
        %730 = vperm.xlu0 %729, %v680
        %v731 = vpop.permute.xlu0 %730
        %734 = vset.pattern.permute.xlu0 0
        %735 = vperm.xlu0 %734, %v681
        %v736 = vpop.permute.xlu0 %735
        %739 = vset.pattern.permute.xlu0 0
        %740 = vperm.xlu0 %739, %v682
        %v741 = vpop.permute.xlu0 %740
        %744 = vset.pattern.permute.xlu0 0
        %745 = vperm.xlu0 %744, %v683
        %v746 = vpop.permute.xlu0 %745
        %749 = vset.pattern.permute.xlu0 0
        %750 = vperm.xlu0 %749, %v684
        %v751 = vpop.permute.xlu0 %750
        %754 = vset.pattern.permute.xlu0 0
        %755 = vperm.xlu0 %754, %v685
        %v756 = vpop.permute.xlu0 %755
        %759 = vset.pattern.permute.xlu0 0
        %760 = vperm.xlu0 %759, %v686
        %v761 = vpop.permute.xlu0 %760
        %764 = vset.pattern.permute.xlu0 0
        %765 = vperm.xlu0 %764, %v687
        %v766 = vpop.permute.xlu0 %765
        %769 = vset.pattern.permute.xlu0 0
        %770 = vperm.xlu0 %769, %v688
        %v771 = vpop.permute.xlu0 %770
        %774 = vset.pattern.permute.xlu0 0
        %775 = vperm.xlu0 %774, %v689
        %v776 = vpop.permute.xlu0 %775
        %779 = vset.pattern.permute.xlu0 0
        %780 = vperm.xlu0 %779, %v690
        %v781 = vpop.permute.xlu0 %780
        %784 = vset.pattern.permute.xlu0 0
        %785 = vperm.xlu0 %784, %v691
        %v786 = vpop.permute.xlu0 %785
        %789 = vset.pattern.permute.xlu0 0
        %790 = vperm.xlu0 %789, %v692
        %v791 = vpop.permute.xlu0 %790
        %794 = vset.pattern.permute.xlu0 0
        %795 = vperm.xlu0 %794, %v693
        %v796 = vpop.permute.xlu0 %795
        %799 = vset.pattern.permute.xlu0 0
        %800 = vperm.xlu0 %799, %v694
        %v801 = vpop.permute.xlu0 %800
        %804 = vset.pattern.permute.xlu0 0
        %805 = vperm.xlu0 %804, %v695
        %v806 = vpop.permute.xlu0 %805
        %809 = vset.pattern.permute.xlu0 0
        %810 = vperm.xlu0 %809, %v696
        %v811 = vpop.permute.xlu0 %810
        %814 = vset.pattern.permute.xlu0 0
        %815 = vperm.xlu0 %814, %v697
        %v816 = vpop.permute.xlu0 %815
        %819 = vset.pattern.permute.xlu0 0
        %820 = vperm.xlu0 %819, %v698
        %v821 = vpop.permute.xlu0 %820
        %824 = vset.pattern.permute.xlu0 0
        %825 = vperm.xlu0 %824, %v699
        %v826 = vpop.permute.xlu0 %825
        %829 = vset.pattern.permute.xlu0 0
        %830 = vperm.xlu0 %829, %v700
        %v831 = vpop.permute.xlu0 %830
        %834 = vset.pattern.permute.xlu0 0
        %835 = vperm.xlu0 %834, %v701
        %v836 = vpop.permute.xlu0 %835
        %839 = vset.pattern.permute.xlu0 0
        %840 = vperm.xlu0 %839, %v702
        %v841 = vpop.permute.xlu0 %840
        %844 = vset.pattern.permute.xlu0 0
        %845 = vperm.xlu0 %844, %v703
        %v846 = vpop.permute.xlu0 %845
        %849 = vset.pattern.permute.xlu0 0
        %850 = vperm.xlu0 %849, %v704
        %v851 = vpop.permute.xlu0 %850
        %854 = vset.pattern.permute.xlu0 0
        %855 = vperm.xlu0 %854, %v705
        %v856 = vpop.permute.xlu0 %855
        %859 = vset.pattern.permute.xlu0 0
        %860 = vperm.xlu0 %859, %v706
        %v861 = vpop.permute.xlu0 %860
        %864 = vset.pattern.permute.xlu0 0
        %865 = vperm.xlu0 %864, %v707
        %v866 = vpop.permute.xlu0 %865
        %v900 = vunpack.c.l.b16 %v644
        %v901 = vunpack.c.l.b16 %v645
        %v902 = vunpack.c.l.b16 %v646
        %v903 = vunpack.c.l.b16 %v647
        %v904 = vunpack.c.l.b16 %v648
        %v905 = vunpack.c.l.b16 %v649
        %v906 = vunpack.c.l.b16 %v650
        %v907 = vunpack.c.l.b16 %v651
        %v908 = vunpack.c.l.b16 %v652
        %v909 = vunpack.c.l.b16 %v653
        %v910 = vunpack.c.l.b16 %v654
        %v911 = vunpack.c.l.b16 %v655
        %v912 = vunpack.c.l.b16 %v656
        %v913 = vunpack.c.l.b16 %v657
        %v914 = vunpack.c.l.b16 %v658
        %v915 = vunpack.c.l.b16 %v659
        %v916 = vunpack.c.l.b16 %v660
        %v917 = vunpack.c.l.b16 %v661
        %v918 = vunpack.c.l.b16 %v662
        %v919 = vunpack.c.l.b16 %v663
        %v920 = vunpack.c.l.b16 %v664
        %v921 = vunpack.c.l.b16 %v665
        %v922 = vunpack.c.l.b16 %v666
        %v923 = vunpack.c.l.b16 %v667
        %v924 = vunpack.c.l.b16 %v668
        %v925 = vunpack.c.l.b16 %v669
        %v926 = vunpack.c.l.b16 %v670
        %v927 = vunpack.c.l.b16 %v671
        %v928 = vunpack.c.l.b16 %v672
        %v929 = vunpack.c.l.b16 %v673
        %v930 = vunpack.c.l.b16 %v674
        %v931 = vunpack.c.l.b16 %v675
        %v932 = vpack.c.b16 %v901, %v900
        %v933 = vpack.c.b16 %v903, %v902
        %v934 = vpack.c.b16 %v905, %v904
        %v935 = vpack.c.b16 %v907, %v906
        %v936 = vpack.c.b16 %v909, %v908
        %v937 = vpack.c.b16 %v911, %v910
        %v938 = vpack.c.b16 %v913, %v912
        %v939 = vpack.c.b16 %v915, %v914
        %v940 = vpack.c.b16 %v917, %v916
        %v941 = vpack.c.b16 %v919, %v918
        %v942 = vpack.c.b16 %v921, %v920
        %v943 = vpack.c.b16 %v923, %v922
        %v944 = vpack.c.b16 %v925, %v924
        %v945 = vpack.c.b16 %v927, %v926
        %v946 = vpack.c.b16 %v929, %v928
        %v947 = vpack.c.b16 %v931, %v930
        %vm948 = vcmask 523264
        %v950 = vsel %vm948, %v932, 0
        %v953 = vsel %vm948, %v933, 0
        %v956 = vsel %vm948, %v934, 0
        %v959 = vsel %vm948, %v935, 0
        %v962 = vsel %vm948, %v936, 0
        %v965 = vsel %vm948, %v937, 0
        %v968 = vsel %vm948, %v938, 0
        %v971 = vsel %vm948, %v939, 0
        %v974 = vsel %vm948, %v940, 0
        %v977 = vsel %vm948, %v941, 0
        %v980 = vsel %vm948, %v942, 0
        %v983 = vsel %vm948, %v943, 0
        %v986 = vsel %vm948, %v944, 0
        %v989 = vsel %vm948, %v945, 0
        %v992 = vsel %vm948, %v946, 0
        %v995 = vsel %vm948, %v947, 0
        %997 = vmatprep.subr.bf16.mxu0 0
        %998 = vmatpush1.bf16.msra.mxu0 %v640
        %999 = vmatprep.subr.bf16.mxu0 0
        %1000 = vmatpush1.bf16.msra.mxu0 %v641
        %1001 = vmatprep.subr.bf16.mxu0 0
        %1002 = vmatpush1.bf16.msra.mxu0 %v642
        %1003 = vmatprep.subr.bf16.mxu0 0
        %1004 = vmatpush1.bf16.msra.mxu0 %v643
        %1005 = vmatprep.subr.bf16.mxu0 0
        %1006 = vmatpush1.bf16.msra.mxu0 0
        %1007 = vmatprep.subr.bf16.mxu0 0
        %1008 = vmatpush1.bf16.msra.mxu0 0
        %1009 = vmatprep.subr.bf16.mxu0 0
        %1010 = vmatpush1.bf16.msra.mxu0 0
        %1011 = vmatprep.subr.bf16.mxu0 0
        %1012 = vmatpush1.bf16.msra.mxu0 0
        %1013 = vmatprep.subr.bf16.mxu0 0
        %1014 = vmatpush1.bf16.msra.mxu0 0
        %1015 = vmatprep.subr.bf16.mxu0 0
        %1016 = vmatpush1.bf16.msra.mxu0 0
        %1017 = vmatprep.subr.bf16.mxu0 0
        %1018 = vmatpush1.bf16.msra.mxu0 0
        %1019 = vmatprep.subr.bf16.mxu0 0
        %1020 = vmatpush1.bf16.msra.mxu0 0
        %1021 = vmatprep.subr.bf16.mxu0 0
        %1022 = vmatpush1.bf16.msra.mxu0 0
        %1023 = vmatprep.subr.bf16.mxu0 0
        %1024 = vmatpush1.bf16.msra.mxu0 0
        %1025 = vmatprep.subr.bf16.mxu0 0
        %1026 = vmatpush1.bf16.msra.mxu0 0
        %1027 = vmatprep.subr.bf16.mxu0 0
        %1028 = vmatpush1.bf16.msra.mxu0 0
        %1029 = vmatprep.mubr.bf16.mxu0 0
        %1030 = vmatmul.mubr.bf16.gmra.mrb[0].mxu0 %v950
        %v1031 = vpop.f32.mrb[0].mxu0
        %v1032 = vadd.f32 %v711, %v1031
        %v1033 = vpop.f32.mrb[0].mxu0
        %v1034 = vpop.f32.mrb[0].mxu0
        %v1035 = vadd.f32 %v716, %v1034
        %v1036 = vpop.f32.mrb[0].mxu0
        %1037 = vmatprep.mubr.bf16.mxu0 0
        %1038 = vmatmul.mubr.bf16.gmra.mrb[0].mxu0 %v953
        %v1039 = vpop.f32.mrb[0].mxu0
        %v1040 = vadd.f32 %v721, %v1039
        %v1041 = vpop.f32.mrb[0].mxu0
        %v1042 = vpop.f32.mrb[0].mxu0
        %v1043 = vadd.f32 %v726, %v1042
        %v1044 = vpop.f32.mrb[0].mxu0
        %1045 = vmatprep.mubr.bf16.mxu0 0
        %1046 = vmatmul.mubr.bf16.gmra.mrb[0].mxu0 %v956
        %v1047 = vpop.f32.mrb[0].mxu0
        %v1048 = vadd.f32 %v731, %v1047
        %v1049 = vpop.f32.mrb[0].mxu0
        %v1050 = vpop.f32.mrb[0].mxu0
        %v1051 = vadd.f32 %v736, %v1050
        %v1052 = vpop.f32.mrb[0].mxu0
        %1053 = vmatprep.mubr.bf16.mxu0 0
        %1054 = vmatmul.mubr.bf16.gmra.mrb[0].mxu0 %v959
        %v1055 = vpop.f32.mrb[0].mxu0
        %v1056 = vadd.f32 %v741, %v1055
        %v1057 = vpop.f32.mrb[0].mxu0
        %v1058 = vpop.f32.mrb[0].mxu0
        %v1059 = vadd.f32 %v746, %v1058
        %v1060 = vpop.f32.mrb[0].mxu0
        %1061 = vmatprep.mubr.bf16.mxu0 0
        %1062 = vmatmul.mubr.bf16.gmra.mrb[0].mxu0 %v962
        %v1063 = vpop.f32.mrb[0].mxu0
        %v1064 = vadd.f32 %v751, %v1063
        %v1065 = vpop.f32.mrb[0].mxu0
        %v1066 = vpop.f32.mrb[0].mxu0
        %v1067 = vadd.f32 %v756, %v1066
        %v1068 = vpop.f32.mrb[0].mxu0
        %1069 = vmatprep.mubr.bf16.mxu0 0
        %1070 = vmatmul.mubr.bf16.gmra.mrb[0].mxu0 %v965
        %v1071 = vpop.f32.mrb[0].mxu0
        %v1072 = vadd.f32 %v761, %v1071
        %v1073 = vpop.f32.mrb[0].mxu0
        %v1074 = vpop.f32.mrb[0].mxu0
        %v1075 = vadd.f32 %v766, %v1074
        %v1076 = vpop.f32.mrb[0].mxu0
        %1077 = vmatprep.mubr.bf16.mxu0 0
        %1078 = vmatmul.mubr.bf16.gmra.mrb[0].mxu0 %v968
        %v1079 = vpop.f32.mrb[0].mxu0
        %v1080 = vadd.f32 %v771, %v1079
        %v1081 = vpop.f32.mrb[0].mxu0
        %v1082 = vpop.f32.mrb[0].mxu0
        %v1083 = vadd.f32 %v776, %v1082
        %v1084 = vpop.f32.mrb[0].mxu0
        %1085 = vmatprep.mubr.bf16.mxu0 0
        %1086 = vmatmul.mubr.bf16.gmra.mrb[0].mxu0 %v971
        %v1087 = vpop.f32.mrb[0].mxu0
        %v1088 = vadd.f32 %v781, %v1087
        %v1089 = vpop.f32.mrb[0].mxu0
        %v1090 = vpop.f32.mrb[0].mxu0
        %v1091 = vadd.f32 %v786, %v1090
        %v1092 = vpop.f32.mrb[0].mxu0
        %1093 = vmatprep.mubr.bf16.mxu0 0
        %1094 = vmatmul.mubr.bf16.gmra.mrb[0].mxu0 %v974
        %v1095 = vpop.f32.mrb[0].mxu0
        %v1096 = vadd.f32 %v791, %v1095
        %v1097 = vpop.f32.mrb[0].mxu0
        %v1098 = vpop.f32.mrb[0].mxu0
        %v1099 = vadd.f32 %v796, %v1098
        %v1100 = vpop.f32.mrb[0].mxu0
        %1101 = vmatprep.mubr.bf16.mxu0 0
        %1102 = vmatmul.mubr.bf16.gmra.mrb[0].mxu0 %v977
        %v1103 = vpop.f32.mrb[0].mxu0
        %v1104 = vadd.f32 %v801, %v1103
        %v1105 = vpop.f32.mrb[0].mxu0
        %v1106 = vpop.f32.mrb[0].mxu0
        %v1107 = vadd.f32 %v806, %v1106
        %v1108 = vpop.f32.mrb[0].mxu0
        %1109 = vmatprep.mubr.bf16.mxu0 0
        %1110 = vmatmul.mubr.bf16.gmra.mrb[0].mxu0 %v980
        %v1111 = vpop.f32.mrb[0].mxu0
        %v1112 = vadd.f32 %v811, %v1111
        %v1113 = vpop.f32.mrb[0].mxu0
        %v1114 = vpop.f32.mrb[0].mxu0
        %v1115 = vadd.f32 %v816, %v1114
        %v1116 = vpop.f32.mrb[0].mxu0
        %1117 = vmatprep.mubr.bf16.mxu0 0
        %1118 = vmatmul.mubr.bf16.gmra.mrb[0].mxu0 %v983
        %v1119 = vpop.f32.mrb[0].mxu0
        %v1120 = vadd.f32 %v821, %v1119
        %v1121 = vpop.f32.mrb[0].mxu0
        %v1122 = vpop.f32.mrb[0].mxu0
        %v1123 = vadd.f32 %v826, %v1122
        %v1124 = vpop.f32.mrb[0].mxu0
        %1125 = vmatprep.mubr.bf16.mxu0 0
        %1126 = vmatmul.mubr.bf16.gmra.mrb[0].mxu0 %v986
        %v1127 = vpop.f32.mrb[0].mxu0
        %v1128 = vadd.f32 %v831, %v1127
        %v1129 = vpop.f32.mrb[0].mxu0
        %v1130 = vpop.f32.mrb[0].mxu0
        %v1131 = vadd.f32 %v836, %v1130
        %v1132 = vpop.f32.mrb[0].mxu0
        %1133 = vmatprep.mubr.bf16.mxu0 0
        %1134 = vmatmul.mubr.bf16.gmra.mrb[0].mxu0 %v989
        %v1135 = vpop.f32.mrb[0].mxu0
        %v1136 = vadd.f32 %v841, %v1135
        %v1137 = vpop.f32.mrb[0].mxu0
        %v1138 = vpop.f32.mrb[0].mxu0
        %v1139 = vadd.f32 %v846, %v1138
        %v1140 = vpop.f32.mrb[0].mxu0
        %1141 = vmatprep.mubr.bf16.mxu0 0
        %1142 = vmatmul.mubr.bf16.gmra.mrb[0].mxu0 %v992
        %v1143 = vpop.f32.mrb[0].mxu0
        %v1144 = vadd.f32 %v851, %v1143
        %v1145 = vpop.f32.mrb[0].mxu0
        %v1146 = vpop.f32.mrb[0].mxu0
        %v1147 = vadd.f32 %v856, %v1146
        %v1148 = vpop.f32.mrb[0].mxu0
        %1149 = vmatprep.mubr.bf16.mxu0 0
        %1150 = vmatmul.mubr.bf16.gmra.mrb[0].mxu0 %v995
        %v1151 = vpop.f32.mrb[0].mxu0
        %v1152 = vadd.f32 %v861, %v1151
        %v1153 = vpop.f32.mrb[0].mxu0
        %v1154 = vpop.f32.mrb[0].mxu0
        %v1155 = vadd.f32 %v866, %v1154
        %v1156 = vpop.f32.mrb[0].mxu0
        %1157 = vdwg.mxu0
        %v1158 = vmax.f32 %v1032, 0.0
        %v1159 = vmax.f32 %v1035, 0.0
        %v1160 = vmax.f32 %v1040, 0.0
        %v1161 = vmax.f32 %v1043, 0.0
        %v1162 = vmax.f32 %v1048, 0.0
        %v1163 = vmax.f32 %v1051, 0.0
        %v1164 = vmax.f32 %v1056, 0.0
        %v1165 = vmax.f32 %v1059, 0.0
        %v1166 = vmax.f32 %v1064, 0.0
        %v1167 = vmax.f32 %v1067, 0.0
        %v1168 = vmax.f32 %v1072, 0.0
        %v1169 = vmax.f32 %v1075, 0.0
        %v1170 = vmax.f32 %v1080, 0.0
        %v1171 = vmax.f32 %v1083, 0.0
        %v1172 = vmax.f32 %v1088, 0.0
        %v1173 = vmax.f32 %v1091, 0.0
        %v1174 = vmax.f32 %v1096, 0.0
        %v1175 = vmax.f32 %v1099, 0.0
        %v1176 = vmax.f32 %v1104, 0.0
        %v1177 = vmax.f32 %v1107, 0.0
        %v1178 = vmax.f32 %v1112, 0.0
        %v1179 = vmax.f32 %v1115, 0.0
        %v1180 = vmax.f32 %v1120, 0.0
        %v1181 = vmax.f32 %v1123, 0.0
        %v1182 = vmax.f32 %v1128, 0.0
        %v1183 = vmax.f32 %v1131, 0.0
        %v1184 = vmax.f32 %v1136, 0.0
        %v1185 = vmax.f32 %v1139, 0.0
        %v1186 = vmax.f32 %v1144, 0.0
        %v1187 = vmax.f32 %v1147, 0.0
        %v1188 = vmax.f32 %v1152, 0.0
        %v1189 = vmax.f32 %v1155, 0.0
        %v1190 = vpack.c.bf16 %v1159, %v1158
        %v1191 = vpack.c.bf16 %v1161, %v1160
        %v1192 = vpack.c.bf16 %v1163, %v1162
        %v1193 = vpack.c.bf16 %v1165, %v1164
        %v1194 = vpack.c.bf16 %v1167, %v1166
        %v1195 = vpack.c.bf16 %v1169, %v1168
        %v1196 = vpack.c.bf16 %v1171, %v1170
        %v1197 = vpack.c.bf16 %v1173, %v1172
        %v1198 = vpack.c.bf16 %v1175, %v1174
        %v1199 = vpack.c.bf16 %v1177, %v1176
        %v1200 = vpack.c.bf16 %v1179, %v1178
        %v1201 = vpack.c.bf16 %v1181, %v1180
        %v1202 = vpack.c.bf16 %v1183, %v1182
        %v1203 = vpack.c.bf16 %v1185, %v1184
        %v1204 = vpack.c.bf16 %v1187, %v1186
        %v1205 = vpack.c.bf16 %v1189, %v1188
        %v1206 = vld [vmem:[%s5] sm:$0xff]
        %v1207 = vld [vmem:[%s5 + $0x8] sm:$0xff]
        %v1208 = vld [vmem:[%s5 + $0x10] sm:$0xff]
        %v1209 = vld [vmem:[%s5 + $0x18] sm:$0xff]
        %v1210 = vld [vmem:[%s5 + $0x20] sm:$0xff]
        %v1211 = vld [vmem:[%s5 + $0x28] sm:$0xff]
        %v1212 = vld [vmem:[%s5 + $0x30] sm:$0xff]
        %v1213 = vld [vmem:[%s5 + $0x38] sm:$0xff]
        %v1214 = vld [vmem:[%s6] sm:$0xff]
        %v1215 = vld [vmem:[%s6 + $0x8] sm:$0xff]
        %v1216 = vld [vmem:[%s6 + $0x10] sm:$0xff]
        %v1217 = vld [vmem:[%s6 + $0x18] sm:$0xff]
        %v1218 = vld [vmem:[%s6 + $0x20] sm:$0xff]
        %v1219 = vld [vmem:[%s6 + $0x28] sm:$0xff]
        %v1220 = vld [vmem:[%s6 + $0x30] sm:$0xff]
        %v1221 = vld [vmem:[%s6 + $0x38] sm:$0xff]
        %1223 = vset.pattern.permute.xlu0 0
        %1224 = vperm.xlu0 %1223, %v1214
        %v1225 = vpop.permute.xlu0 %1224
        %1228 = vset.pattern.permute.xlu0 0
        %1229 = vperm.xlu0 %1228, %v1215
        %v1230 = vpop.permute.xlu0 %1229
        %1233 = vset.pattern.permute.xlu0 0
        %1234 = vperm.xlu0 %1233, %v1216
        %v1235 = vpop.permute.xlu0 %1234
        %1238 = vset.pattern.permute.xlu0 0
        %1239 = vperm.xlu0 %1238, %v1217
        %v1240 = vpop.permute.xlu0 %1239
        %1243 = vset.pattern.permute.xlu0 0
        %1244 = vperm.xlu0 %1243, %v1218
        %v1245 = vpop.permute.xlu0 %1244
        %1248 = vset.pattern.permute.xlu0 0
        %1249 = vperm.xlu0 %1248, %v1219
        %v1250 = vpop.permute.xlu0 %1249
        %1253 = vset.pattern.permute.xlu0 0
        %1254 = vperm.xlu0 %1253, %v1220
        %v1255 = vpop.permute.xlu0 %1254
        %1258 = vset.pattern.permute.xlu0 0
        %1259 = vperm.xlu0 %1258, %v1221
        %v1260 = vpop.permute.xlu0 %1259
        %v1270 = vunpack.c.l.b16 %v1206
        %v1271 = vunpack.c.h.b16 %v1206
        %v1272 = vunpack.c.l.b16 %v1207
        %v1273 = vunpack.c.h.b16 %v1207
        %v1274 = vunpack.c.l.b16 %v1208
        %v1275 = vunpack.c.h.b16 %v1208
        %v1276 = vunpack.c.l.b16 %v1209
        %v1277 = vunpack.c.h.b16 %v1209
        %v1278 = vunpack.c.l.b16 %v1210
        %v1279 = vunpack.c.h.b16 %v1210
        %v1280 = vunpack.c.l.b16 %v1211
        %v1281 = vunpack.c.h.b16 %v1211
        %v1282 = vunpack.c.l.b16 %v1212
        %v1283 = vunpack.c.h.b16 %v1212
        %v1284 = vunpack.c.l.b16 %v1213
        %v1285 = vunpack.c.h.b16 %v1213
        %v1286 = vpack.c.b16 %v1272, %v1270
        %v1287 = vpack.c.b16 %v1273, %v1271
        %v1288 = vpack.c.b16 %v1276, %v1274
        %v1289 = vpack.c.b16 %v1277, %v1275
        %v1290 = vpack.c.b16 %v1280, %v1278
        %v1291 = vpack.c.b16 %v1281, %v1279
        %v1292 = vpack.c.b16 %v1284, %v1282
        %v1293 = vpack.c.b16 %v1285, %v1283
        %1302 = vmatprep.subr.bf16.mxu0 0
        %1303 = vmatpush1.bf16.msra.mxu0 %v1190
        %1304 = vmatprep.subr.bf16.mxu0 0
        %1305 = vmatpush1.bf16.msra.mxu0 %v1191
        %1306 = vmatprep.subr.bf16.mxu0 0
        %1307 = vmatpush1.bf16.msra.mxu0 %v1192
        %1308 = vmatprep.subr.bf16.mxu0 0
        %1309 = vmatpush1.bf16.msra.mxu0 %v1193
        %1310 = vmatprep.subr.bf16.mxu0 0
        %1311 = vmatpush1.bf16.msra.mxu0 %v1194
        %1312 = vmatprep.subr.bf16.mxu0 0
        %1313 = vmatpush1.bf16.msra.mxu0 %v1195
        %1314 = vmatprep.subr.bf16.mxu0 0
        %1315 = vmatpush1.bf16.msra.mxu0 %v1196
        %1316 = vmatprep.subr.bf16.mxu0 0
        %1317 = vmatpush1.bf16.msra.mxu0 %v1197
        %1318 = vmatprep.subr.bf16.mxu0 0
        %1319 = vmatpush1.bf16.msra.mxu0 %v1198
        %1320 = vmatprep.subr.bf16.mxu0 0
        %1321 = vmatpush1.bf16.msra.mxu0 %v1199
        %1322 = vmatprep.subr.bf16.mxu0 0
        %1323 = vmatpush1.bf16.msra.mxu0 %v1200
        %1324 = vmatprep.subr.bf16.mxu0 0
        %1325 = vmatpush1.bf16.msra.mxu0 %v1201
        %1326 = vmatprep.subr.bf16.mxu0 0
        %1327 = vmatpush1.bf16.msra.mxu0 %v1202
        %1328 = vmatprep.subr.bf16.mxu0 0
        %1329 = vmatpush1.bf16.msra.mxu0 %v1203
        %1330 = vmatprep.subr.bf16.mxu0 0
        %1331 = vmatpush1.bf16.msra.mxu0 %v1204
        %1332 = vmatprep.subr.bf16.mxu0 0
        %1333 = vmatpush1.bf16.msra.mxu0 %v1205
        %1334 = vmatprep.mubr.bf16.mxu0 %v1287
        %1335 = vmatmul.mubr.bf16.gmra.mrb[0].mxu0 %v1286
        %v1336 = vpop.f32.mrb[0].mxu0
        %v1337 = vadd.f32 %v1225, %v1336
        %v1338 = vpop.f32.mrb[0].mxu0
        %v1339 = vpop.f32.mrb[0].mxu0
        %v1340 = vadd.f32 %v1230, %v1339
        %v1341 = vpop.f32.mrb[0].mxu0
        %1342 = vmatprep.mubr.bf16.mxu0 %v1289
        %1343 = vmatmul.mubr.bf16.gmra.mrb[0].mxu0 %v1288
        %v1344 = vpop.f32.mrb[0].mxu0
        %v1345 = vadd.f32 %v1235, %v1344
        %v1346 = vpop.f32.mrb[0].mxu0
        %v1347 = vpop.f32.mrb[0].mxu0
        %v1348 = vadd.f32 %v1240, %v1347
        %v1349 = vpop.f32.mrb[0].mxu0
        %1350 = vmatprep.mubr.bf16.mxu0 %v1291
        %1351 = vmatmul.mubr.bf16.gmra.mrb[0].mxu0 %v1290
        %v1352 = vpop.f32.mrb[0].mxu0
        %v1353 = vadd.f32 %v1245, %v1352
        %v1354 = vpop.f32.mrb[0].mxu0
        %v1355 = vpop.f32.mrb[0].mxu0
        %v1356 = vadd.f32 %v1250, %v1355
        %v1357 = vpop.f32.mrb[0].mxu0
        %1358 = vmatprep.mubr.bf16.mxu0 %v1293
        %1359 = vmatmul.mubr.bf16.gmra.mrb[0].mxu0 %v1292
        %v1360 = vpop.f32.mrb[0].mxu0
        %v1361 = vadd.f32 %v1255, %v1360
        %v1362 = vpop.f32.mrb[0].mxu0
        %v1363 = vpop.f32.mrb[0].mxu0
        %v1364 = vadd.f32 %v1260, %v1363
        %v1365 = vpop.f32.mrb[0].mxu0
        %1366 = vdwg.mxu0
        %v1367 = vmax.f32 %v1337, 0.0
        %v1368 = vmax.f32 %v1340, 0.0
        %v1369 = vmax.f32 %v1345, 0.0
        %v1370 = vmax.f32 %v1348, 0.0
        %v1371 = vmax.f32 %v1353, 0.0
        %v1372 = vmax.f32 %v1356, 0.0
        %v1373 = vmax.f32 %v1361, 0.0
        %v1374 = vmax.f32 %v1364, 0.0
        %v1375 = vpack.c.bf16 %v1368, %v1367
        %v1376 = vpack.c.bf16 %v1370, %v1369
        %v1377 = vpack.c.bf16 %v1372, %v1371
        %v1378 = vpack.c.bf16 %v1374, %v1373
        %v1379 = vld [vmem:[%s7] sm:$0xf]
        %v1380 = vld [vmem:[%s7 + $0x4] sm:$0xf]
        %v1381 = vld [vmem:[%s8] sm:$0xff]
        %v1382 = vld [vmem:[%s8 + $0x8] sm:$0xff]
        %1384 = vset.pattern.permute.xlu0 0
        %1385 = vperm.xlu0 %1384, %v1381
        %v1386 = vpop.permute.xlu0 %1385
        %1389 = vset.pattern.permute.xlu0 0
        %1390 = vperm.xlu0 %1389, %v1382
        %v1391 = vpop.permute.xlu0 %1390
        %v1395 = vunpack.c.l.b16 %v1379
        %v1396 = vunpack.c.l.b16 %v1380
        %v1397 = vpack.c.b16 %v1396, %v1395
        %v1399 = vsel %vm948, %v1397, 0
        %1401 = vmatprep.subr.bf16.mxu0 0
        %1402 = vmatpush1.bf16.msra.mxu0 %v1375
        %1403 = vmatprep.subr.bf16.mxu0 0
        %1404 = vmatpush1.bf16.msra.mxu0 %v1376
        %1405 = vmatprep.subr.bf16.mxu0 0
        %1406 = vmatpush1.bf16.msra.mxu0 %v1377
        %1407 = vmatprep.subr.bf16.mxu0 0
        %1408 = vmatpush1.bf16.msra.mxu0 %v1378
        %1409 = vmatprep.subr.bf16.mxu0 0
        %1410 = vmatpush1.bf16.msra.mxu0 0
        %1411 = vmatprep.subr.bf16.mxu0 0
        %1412 = vmatpush1.bf16.msra.mxu0 0
        %1413 = vmatprep.subr.bf16.mxu0 0
        %1414 = vmatpush1.bf16.msra.mxu0 0
        %1415 = vmatprep.subr.bf16.mxu0 0
        %1416 = vmatpush1.bf16.msra.mxu0 0
        %1417 = vmatprep.subr.bf16.mxu0 0
        %1418 = vmatpush1.bf16.msra.mxu0 0
        %1419 = vmatprep.subr.bf16.mxu0 0
        %1420 = vmatpush1.bf16.msra.mxu0 0
        %1421 = vmatprep.subr.bf16.mxu0 0
        %1422 = vmatpush1.bf16.msra.mxu0 0
        %1423 = vmatprep.subr.bf16.mxu0 0
        %1424 = vmatpush1.bf16.msra.mxu0 0
        %1425 = vmatprep.subr.bf16.mxu0 0
        %1426 = vmatpush1.bf16.msra.mxu0 0
        %1427 = vmatprep.subr.bf16.mxu0 0
        %1428 = vmatpush1.bf16.msra.mxu0 0
        %1429 = vmatprep.subr.bf16.mxu0 0
        %1430 = vmatpush1.bf16.msra.mxu0 0
        %1431 = vmatprep.subr.bf16.mxu0 0
        %1432 = vmatpush1.bf16.msra.mxu0 0
        %1433 = vmatprep.mubr.bf16.mxu0 0
        %1434 = vmatmul.mubr.bf16.gmra.mrb[0].mxu0 %v1399
        %v1435 = vpop.f32.mrb[0].mxu0
        %v1436 = vadd.f32 %v1386, %v1435
        %v1437 = vpop.f32.mrb[0].mxu0
        %v1438 = vpop.f32.mrb[0].mxu0
        %v1439 = vadd.f32 %v1391, %v1438
        %v1440 = vpop.f32.mrb[0].mxu0
        %1441 = vdwg.mxu0
        %v1442 = vmax.f32 %v1436, 0.0
        %v1443 = vmax.f32 %v1439, 0.0
        %v1444 = vld [vmem:[%s9] sm:$0xff]
        %v1445 = vld [vmem:[%s9 + $0x8] sm:$0xff]
        %1447 = vset.pattern.permute.xlu0 0
        %1448 = vperm.xlu0 %1447, %v1444
        %v1449 = vpop.permute.xlu0 %1448
        %1452 = vset.pattern.permute.xlu0 0
        %1453 = vperm.xlu0 %1452, %v1445
        %v1454 = vpop.permute.xlu0 %1453
        %v1456 = vmul.f32 %v1442, %v1449
        %v1457 = vmul.f32 %v1443, %v1454
        %v1458 = vadd.f32 %v1456, %v1457
        %v1459 = vrot.slane %v1458, 4
        %v1460 = vadd.f32 %v1458, %v1459
        %v1461 = vrot.slane %v1460, 2
        %v1462 = vadd.f32 %v1460, %v1461
        %v1463 = vrot.slane %v1462, 1
        %v1464 = vadd.f32 %v1462, %v1463
        %v1465 = vld [vmem:[#allocation2] sm:$0x1]
        %1467 = vset.pattern.permute.xlu0 0
        %1468 = vperm.xlu0 %1467, %v1465
        %v1469 = vpop.permute.xlu0 %1468
        %v1471 = vlaneseq
        %v1472 = vshrl.u32 %v1471, 7
        %v1473 = vsub.s32 0, %v1472
        %v1474 = vrot.slane %v1469, %v1473
        %v1475 = vadd.f32 %v1464, %v1474
        %1476 = vst [vmem:[%s446] sm:$0x1] %v1475
        %s1477 = sand.u32 %s271, 1
        %s1478 = scalar_lea.sflag [#allocation5], %s1477
        %s1479 = sand.u32 %s271, 1
        %s1480 = scalar_lea.vmem [#allocation4], %s1479
        // Predicated region
        $region106: #{tpu_custom_call.1} parent=100 // pred_check
          %p1481 = pneg %p281
        $region107: #{tpu_custom_call.1} parent=100 // pred_check_branch
          %1483 = sbr.rel (%p1481) target = $region109
        $region108: #{tpu_custom_call.1} parent=100 // pred_region
          %s1485 = ssub.s32 16, 16
          %1486 = vsyncadd %s1478, %s1485
          %s1487 = smul.addr %s27, 16
          %s1488 = scalar_lea.hbm %s11, %s1487
          %s1490 = sshll.u32 %s1480, 4
          %s1491 = int_to_ptr.vmem [resolvable:$true] %s1490
          %1493 = dma.vmem_to_hbm [thread:$0]  %s1491, 16, %s1488, %s1478
        $region109: #{tpu_custom_call.1} parent=100 // pred_fallthru
          _
      $region101: #{tpu_custom_call.1} parent=5 // pred_fallthru
        _
      %p1494 = scmp.le.s32.totalorder 2, %s22
      // Predicated region
      $region110: #{tpu_custom_call.1} parent=5 // pred_check
        %p1495 = pneg %p1494
      $region111: #{tpu_custom_call.1} parent=5 // pred_check_branch
        %1497 = sbr.rel (%p1495) target = $region113
      $region112: #{tpu_custom_call.1} parent=5 // pred_region
        %s1498 = ssub.s32 %s22, 2
        // Predicated region
        $region114: #{tpu_custom_call.1} parent=112 // pred_check
          %p1499 = pneg %p287
        $region115: #{tpu_custom_call.1} parent=112 // pred_check_branch
          %1501 = sbr.rel (%p1499) target = $region117
        $region116: #{tpu_custom_call.1} parent=112 // pred_region
          %s1502 = sand.u32 %s272, 1
          %s1503 = scalar_lea.sflag [#allocation5], %s1502
          %s1504 = sand.u32 %s272, 1
          %s1505 = scalar_lea.vmem [#allocation4], %s1504
          %1506 = dma.done %s1503, 16
        $region117: #{tpu_custom_call.1} parent=112 // pred_fallthru
          _
      $region113: #{tpu_custom_call.1} parent=5 // pred_fallthru
        _
    $region6: #{tpu_custom_call.1} parent=1 // loop_footer
      %s26 = sadd.s32 1, %s22
    $region7: #{tpu_custom_call.1} parent=1 // loop_footer_branch
      %21 = sbr.rel target = $region3
    $region8: #{tpu_custom_call.1} parent=1 // loop_exit
      _
    %1507 = vsyncpa [#allocation5], 1
    %s1508 = scalar_lea.sflag [#allocation5], 1
    %1509 = vsyncpa %s1508, 1

</llo_original>
